<compile_context>
chip_gen: v7x
topology: tpu7x:2x2x1
jax: 0.10.0
libtpu: 0.0.40
codegen_flags: <defaults>
</compile_context>

<pallas_src>
import functools

import jax
import jax.numpy as jnp
from jax import lax
from jax.experimental import pallas as pl
from jax.experimental.pallas import tpu as pltpu


def _round_up(x, m):
    return ((x + m - 1) // m) * m


_B_RESIDENT_MAX_BYTES = 12 * 1024 * 1024   # keep (2x-buffered) resident B well
                                           # under v7x's 64 MiB VMEM ceiling

_COMPILER_PARAMS = pltpu.CompilerParams(
    dimension_semantics=("parallel", "arbitrary"),
    vmem_limit_bytes=48 * 1024 * 1024,     # explicit limit with v7x headroom
)


def _b_spec(b, tk, b_resident_max_bytes):
    """BlockSpec for the dense B operand: VMEM-resident if small, else streamed."""
    kp, n = b.shape
    nbytes = int(b.size) * b.dtype.itemsize
    if nbytes <= b_resident_max_bytes:
        # Constant block index -> single DMA, B stays VMEM-resident across tiles.
        return pl.BlockSpec((kp, n), lambda i, kk: (0, 0)), True
    return pl.BlockSpec((tk, n), lambda i, kk: (kk, 0)), False


# ---------------------------------------------------------------------------
# Kernel 1: propagation hop   O = A @ B    (f32 accumulate, bf16 writeback)
# ---------------------------------------------------------------------------
def _propagate_kernel(a_ref, b_ref, o_ref, acc_ref, *, tk, b_resident):
    kk = pl.program_id(1)

    @pl.when(kk == 0)
    def _init():
        acc_ref[...] = jnp.zeros_like(acc_ref)

    if b_resident:
        start = pl.multiple_of(kk * tk, tk)
        b_tile = b_ref[pl.ds(start, tk), :]
    else:
        b_tile = b_ref[...]

    acc_ref[...] += jnp.dot(a_ref[...], b_tile,
                            preferred_element_type=jnp.float32)

    @pl.when(kk == pl.num_programs(1) - 1)
    def _finalize():
        o_ref[...] = acc_ref[...].astype(o_ref.dtype)


# ---------------------------------------------------------------------------
# Kernel 2: propagation hop with fused linear + bias + log_softmax epilogue
#   O = log_softmax((A @ B) @ W + bias)   over the first num_valid_cols columns
# ---------------------------------------------------------------------------
def _propagate_linear_logsoftmax_kernel(a_ref, b_ref, w_ref, bias_ref, o_ref,
                                        acc_ref, *, tk, b_resident,
                                        num_valid_cols):
    kk = pl.program_id(1)

    @pl.when(kk == 0)
    def _init():
        acc_ref[...] = jnp.zeros_like(acc_ref)

    if b_resident:
        start = pl.multiple_of(kk * tk, tk)
        b_tile = b_ref[pl.ds(start, tk), :]
    else:
        b_tile = b_ref[...]

    acc_ref[...] += jnp.dot(a_ref[...], b_tile,
                            preferred_element_type=jnp.float32)

    @pl.when(kk == pl.num_programs(1) - 1)
    def _finalize():
        h = acc_ref[...].astype(w_ref.dtype)          # bf16 MXU operand
        logits = jnp.dot(h, w_ref[...],
                         preferred_element_type=jnp.float32) + bias_ref[...]
        # Class dim is zero-padded to a lane-dense multiple of 128; mask pads.
        col = lax.broadcasted_iota(jnp.int32, logits.shape, 1)
        valid = col < num_valid_cols
        masked = jnp.where(valid, logits, jnp.float32(-1e30))
        m = jnp.max(masked, axis=-1, keepdims=True)
        s = masked - m
        lse = jnp.log(jnp.sum(jnp.where(valid, jnp.exp(s), 0.0),
                              axis=-1, keepdims=True))
        o_ref[...] = (s - lse).astype(o_ref.dtype)


# ---------------------------------------------------------------------------
# pallas_call wrappers (operands are pre-padded / pre-cast by the caller)
# ---------------------------------------------------------------------------
def pallas_propagate(a_p, b_p, *, tm, tk, out_dtype=jnp.bfloat16,
                     b_resident_max_bytes=_B_RESIDENT_MAX_BYTES):
    """O = A @ B with A:(mp,kp) bf16, B:(kp,n) bf16, n a multiple of 128."""
    mp, kp = a_p.shape
    kp2, n = b_p.shape
    assert kp == kp2 and mp % tm == 0 and kp % tk == 0 and n % 128 == 0
    b_spec, b_resident = _b_spec(b_p, tk, b_resident_max_bytes)
    kernel = functools.partial(_propagate_kernel, tk=tk, b_resident=b_resident)
    return pl.pallas_call(
        kernel,
        out_shape=jax.ShapeDtypeStruct((mp, n), out_dtype),
        grid=(mp // tm, kp // tk),
        in_specs=[pl.BlockSpec((tm, tk), lambda i, kk: (i, kk)),  # A tiles
                  b_spec],                                        # B (X / H)
        out_specs=pl.BlockSpec((tm, n), lambda i, kk: (i, 0)),
        scratch_shapes=[pltpu.VMEM((tm, n), jnp.float32)],
        compiler_params=_COMPILER_PARAMS,
    )(a_p, b_p)


def pallas_propagate_linear_logsoftmax(a_p, b_p, w_p, bias_p, *, tm, tk,
                                       num_valid_cols,
                                       b_resident_max_bytes=_B_RESIDENT_MAX_BYTES):
    """O = log_softmax((A @ B) @ W + bias) on pre-padded operands."""
    mp, kp = a_p.shape
    kp2, f = b_p.shape
    f2, c = w_p.shape
    assert kp == kp2 and f == f2
    assert mp % tm == 0 and kp % tk == 0 and f % 128 == 0 and c % 128 == 0
    b_spec, b_resident = _b_spec(b_p, tk, b_resident_max_bytes)
    kernel = functools.partial(_propagate_linear_logsoftmax_kernel, tk=tk,
                               b_resident=b_resident,
                               num_valid_cols=num_valid_cols)
    return pl.pallas_call(
        kernel,
        out_shape=jax.ShapeDtypeStruct((mp, c), jnp.float32),
        grid=(mp // tm, kp // tk),
        in_specs=[
            pl.BlockSpec((tm, tk), lambda i, kk: (i, kk)),   # A tiles
            b_spec,                                          # B (propagated H)
            pl.BlockSpec((f, c), lambda i, kk: (0, 0)),      # W (VMEM-resident)
            pl.BlockSpec((1, c), lambda i, kk: (0, 0)),      # bias row
        ],
        out_specs=pl.BlockSpec((tm, c), lambda i, kk: (i, 0)),
        scratch_shapes=[pltpu.VMEM((tm, f), jnp.float32)],
        compiler_params=_COMPILER_PARAMS,
    )(a_p, b_p, w_p, bias_p)


# ---------------------------------------------------------------------------
# Plain-JAX glue: gcn_norm (dense) + parameter init + forward
# ---------------------------------------------------------------------------
def gcn_norm_dense(edge_index, num_nodes):
    """Dense D^{-1/2} (A + I) D^{-1/2}, matching torch_geometric's gcn_norm.

    add_remaining_self_loops with unit edge weights leaves every node with
    exactly one unit self-loop, so forcing the diagonal to 1 matches PyG.
    """
    src, dst = edge_index[0], edge_index[1]
    a = jnp.zeros((num_nodes, num_nodes), jnp.float32).at[dst, src].add(1.0)
    eye = jnp.eye(num_nodes, dtype=jnp.float32)
    a = a * (1.0 - eye) + eye
    deg = a.sum(axis=1)                    # in-degree incl. self loop
    dinv = jnp.where(deg > 0, lax.rsqrt(deg), 0.0)
    return dinv[:, None] * a * dinv[None, :]


def init_sgc_params(key, num_features, num_classes):
    kw, kb = jax.random.split(key)
    limit = (6.0 / (num_features + num_classes)) ** 0.5
    w = jax.random.uniform(kw, (num_features, num_classes), jnp.float32,
                           -limit, limit)
    b = jax.random.uniform(kb, (1, num_classes), jnp.float32, -0.1, 0.1)
    return {"w": w, "b": b}


def sgc_forward(params, x, edge_index, *, k_hops=2,
                b_resident_max_bytes=_B_RESIDENT_MAX_BYTES):
    n, f = x.shape
    c = params["w"].shape[1]
    adj = gcn_norm_dense(edge_index, n)

    # Tile selection (feedback): big node tile for bandwidth, tk | tm so a single
    # node-dim padding serves both the row and contraction axes.
    tm = min(512, _round_up(n, 128))
    tk = 256 if tm % 256 == 0 else 128
    p = _round_up(n, tm)                 # padded node dim (tk divides tm)
    f_pad = _round_up(f, 128)
    c_pad = _round_up(c, 128)
    # TODO(synk): on v7x, when p // tm < 2 shrink tm so the "parallel" node axis
    # can still shard across both TensorCores.

    # Pad + bf16-cast exactly once (hoisted out of the hop loop).
    adj_p = jnp.zeros((p, p), jnp.bfloat16).at[:n, :n].set(adj.astype(jnp.bfloat16))
    h = jnp.zeros((p, f_pad), jnp.bfloat16).at[:n, :f].set(x.astype(jnp.bfloat16))
    w_p = jnp.zeros((f_pad, c_pad), jnp.bfloat16).at[:f, :c].set(
        params["w"].astype(jnp.bfloat16))
    bias_p = jnp.zeros((1, c_pad), jnp.float32).at[:, :c].set(
        params["b"].reshape(1, c).astype(jnp.float32))

    # First K-1 hops: plain propagation (bf16 intermediates).
    for _ in range(k_hops - 1):
        h = pallas_propagate(adj_p, h, tm=tm, tk=tk, out_dtype=jnp.bfloat16,
                             b_resident_max_bytes=b_resident_max_bytes)
    # Last hop fused with the linear layer + bias + log_softmax epilogue.
    out_p = pallas_propagate_linear_logsoftmax(
        adj_p, h, w_p, bias_p, tm=tm, tk=tk, num_valid_cols=c,
        b_resident_max_bytes=b_resident_max_bytes)
    return out_p[:n, :c]


# ---------------------------------------------------------------------------
if __name__ == "__main__":
    # Small synthetic graph standing in for ogbn-arxiv.
    N_NODES = 640          # -> tm=512, tk=256, padded node dim 1024, grid (2, 4)
    N_EDGES = 2560
    NUM_FEATURES = 128     # ogbn-arxiv feature width
    NUM_CLASSES = 40       # ogbn-arxiv class count (padded to 128 in-kernel)

    key = jax.random.PRNGKey(0)
    k_feat, k_edge, k_param = jax.random.split(key, 3)

    x = jax.random.normal(k_feat, (N_NODES, NUM_FEATURES), jnp.float32)
    edge_index = jax.random.randint(k_edge, (2, N_EDGES), 0, N_NODES, jnp.int32)
    params = init_sgc_params(k_param, NUM_FEATURES, NUM_CLASSES)

    # Default path (small B -> VMEM-resident B).
    out = sgc_forward(params, x, edge_index, k_hops=2)
    out = jax.block_until_ready(out)
    # Streaming-B path (what large graphs use); must match.
    out_stream = sgc_forward(params, x, edge_index, k_hops=2,
                             b_resident_max_bytes=0)
    out_stream = jax.block_until_ready(out_stream)

    # ---- checks ----
    assert out.shape == (N_NODES, NUM_CLASSES)
    assert bool(jnp.all(jnp.isfinite(out)))
    # log_softmax rows must exponentiate to a probability distribution
    row_sums = jnp.exp(out).sum(axis=1)
    assert bool(jnp.allclose(row_sums, 1.0, atol=1e-4))
    assert bool(jnp.allclose(out, out_stream, atol=1e-3)), \
        float(jnp.max(jnp.abs(out - out_stream)))

    # pure-JAX reference with the same bf16 matmul inputs / f32 accumulation
    adj = gcn_norm_dense(edge_index, N_NODES)
    h_ref = x
    for _ in range(2):
        h_ref = jnp.dot(adj.astype(jnp.bfloat16), h_ref.astype(jnp.bfloat16),
                        preferred_element_type=jnp.float32)
    logits_ref = jnp.dot(h_ref.astype(jnp.bfloat16),
                         params["w"].astype(jnp.bfloat16),
                         preferred_element_type=jnp.float32) + params["b"]
    ref = jax.nn.log_softmax(logits_ref, axis=-1)
    assert bool(jnp.allclose(out, ref, atol=2e-2)), float(jnp.max(jnp.abs(out - ref)))

    print("KERNEL_OK")
</pallas_src>

<mosaic_0001>
module attributes {stable_mosaic.version = 11 : i64} {
  func.func @_propagate_kernel(%arg0: i32, %arg1: i32, %arg2: memref<512x256xbf16, #tpu.memory_space<vmem>>, %arg3: memref<1024x128xbf16, #tpu.memory_space<vmem>>, %arg4: memref<512x128xbf16, #tpu.memory_space<vmem>>, %arg5: memref<512x128xf32, #tpu.memory_space<vmem>>) attributes {dimension_semantics = [#tpu.dimension_semantics<parallel>, #tpu.dimension_semantics<arbitrary>], iteration_bounds = array<i64: 2, 4>, scalar_prefetch = 0 : i64, scratch_operands = 1 : i64, tpu.core_type = #tpu.core_type<tc>, window_params = [{transform_indices = @transform_0, window_bounds = array<i64: 512, 256>}, {pipeline_mode = #tpu.pipeline_mode<synchronous>, transform_indices = @transform_1, window_bounds = array<i64: 1024, 128>}, {transform_indices = @transform_2, window_bounds = array<i64: 512, 128>}]} {
    %c0_i32 = arith.constant 0 : i32
    %0 = arith.cmpi eq, %arg1, %c0_i32 : i32
    %1 = arith.extui %0 : i1 to i32
    %c0_i32_0 = arith.constant 0 : i32
    %2 = arith.cmpi ne, %1, %c0_i32_0 : i32
    scf.if %2 {
      %cst_8 = arith.constant 0.000000e+00 : f32
      %15 = vector.broadcast %cst_8 : f32 to vector<512x128xf32>
      %c0_9 = arith.constant 0 : index
      %c0_10 = arith.constant 0 : index
      %16 = vector.load %arg5[%c0_9, %c0_10] : memref<512x128xf32, #tpu.memory_space<vmem>>, vector<512x128xf32>
      tpu.vector_store %arg5[%c0_9, %c0_10], %15 {strides = array<i32>} : memref<512x128xf32, #tpu.memory_space<vmem>>, vector<512x128xf32>,
    } else {
    }
    %c256_i32 = arith.constant 256 : i32
    %3 = arith.muli %arg1, %c256_i32 : i32
    %4 = tpu.assume_multiple %3, 256 : i32
    %5 = arith.index_cast %4 : i32 to index
    %c0 = arith.constant 0 : index
    %6 = vector.load %arg3[%5, %c0] : memref<1024x128xbf16, #tpu.memory_space<vmem>>, vector<256x128xbf16>
    %c0_1 = arith.constant 0 : index
    %c0_2 = arith.constant 0 : index
    %7 = vector.load %arg5[%c0_1, %c0_2] : memref<512x128xf32, #tpu.memory_space<vmem>>, vector<512x128xf32>
    %c0_3 = arith.constant 0 : index
    %c0_4 = arith.constant 0 : index
    %8 = vector.load %arg2[%c0_3, %c0_4] : memref<512x256xbf16, #tpu.memory_space<vmem>>, vector<512x256xbf16>
    %cst = arith.constant dense<0.000000e+00> : vector<512x128xf32>
    %9 = tpu.matmul %8, %6, %cst {dimension_numbers = #tpu.dot_dimension_numbers<[1], [0], [0], [1], [0, 0, 1, 1], [], []>} : vector<512x256xbf16>, vector<256x128xbf16>, vector<512x128xf32> -> vector<512x128xf32>
    %10 = arith.addf %7, %9 : vector<512x128xf32>
    %c0_5 = arith.constant 0 : index
    %c0_6 = arith.constant 0 : index
    %11 = vector.load %arg5[%c0_5, %c0_6] : memref<512x128xf32, #tpu.memory_space<vmem>>, vector<512x128xf32>
    tpu.vector_store %arg5[%c0_5, %c0_6], %10 {strides = array<i32>} : memref<512x128xf32, #tpu.memory_space<vmem>>, vector<512x128xf32>,
    %c3_i32 = arith.constant 3 : i32
    %12 = arith.cmpi eq, %arg1, %c3_i32 : i32
    %13 = arith.extui %12 : i1 to i32
    %c0_i32_7 = arith.constant 0 : i32
    %14 = arith.cmpi ne, %13, %c0_i32_7 : i32
    scf.if %14 {
      %c0_8 = arith.constant 0 : index
      %c0_9 = arith.constant 0 : index
      %15 = vector.load %arg5[%c0_8, %c0_9] : memref<512x128xf32, #tpu.memory_space<vmem>>, vector<512x128xf32>
      %16 = arith.truncf %15 : vector<512x128xf32> to vector<512x128xbf16>
      %c0_10 = arith.constant 0 : index
      %c0_11 = arith.constant 0 : index
      %17 = vector.load %arg4[%c0_10, %c0_11] : memref<512x128xbf16, #tpu.memory_space<vmem>>, vector<512x128xbf16>
      tpu.vector_store %arg4[%c0_10, %c0_11], %16 {strides = array<i32>} : memref<512x128xbf16, #tpu.memory_space<vmem>>, vector<512x128xbf16>,
    } else {
    }
    return
  }
  func.func @transform_0(%arg0: i32, %arg1: i32) -> (i32, i32) {
    %c0_i32 = arith.constant 0 : i32
    return %arg0, %arg1 : i32, i32
  }
  func.func @transform_1(%arg0: i32, %arg1: i32) -> (i32, i32) {
    %c0_i32 = arith.constant 0 : i32
    %c0_i32_0 = arith.constant 0 : i32
    %c0_i32_1 = arith.constant 0 : i32
    return %c0_i32, %c0_i32_0 : i32, i32
  }
  func.func @transform_2(%arg0: i32, %arg1: i32) -> (i32, i32) {
    %c0_i32 = arith.constant 0 : i32
    %c0_i32_0 = arith.constant 0 : i32
    return %arg0, %c0_i32 : i32, i32
  }
}

</mosaic_0001>

<llo_original>
// kernel: tpu_custom_call.1
$region0: #{tpu_custom_call.1}
  #allocation0 [shape = 'u32[]', space=smem, size = 0x4, offset = 0x4, fixed_abs, tag = 'smem constant byte address 0x4 - core index']
  #allocation1 [shape = 'u32[144,128]{1,0:T(1,128)}', space=vmem, size = 0x12000, scoped, tag = 'internal scratch']
  #allocation2 [shape = 'f32[512,128]{1,0:T(8,128)}', space=vmem, size = 0x40000, scoped, tag = 'scratch operand']
  %s0 = inlined_call_operand.hbm [shape: bf16[1024,1024], index: 0, kind: input, shape index: {}]
  %s1 = inlined_call_operand.hbm [shape: bf16[1024,128], index: 1, kind: input, shape index: {}]
  %s2 = inlined_call_operand.hbm [shape: bf16[1024,128], index: 2, kind: output, shape index: {}]
  %s3 = sld [smem:[#allocation0]]
  $region57: #{tpu_custom_call.1} parent=0
    _
  %s5 = ssub.s32 1, %s3
  %s6 = scalar_select 0, %s5, %s3
  $region1: #{tpu_custom_call.1} parent=0
    #allocation3 [shape = 'u8[524288]{0}', space=vmem, size = 0x80000, scoped, tag = 'input window, operand 0']
    #allocation4 [shape = 's32[2]{0}', space=sflag, size = 0x8, scoped, tag = 'scoped memory for tpu_custom_call.1']
    #allocation5 [shape = 's32[2]{0}', space=sflag, size = 0x8, scoped, tag = 'scoped memory for tpu_custom_call.1']
    #allocation6 [shape = 'u8[262144]{0}', space=vmem, size = 0x40000, scoped, tag = 'input window, operand 1, single buffered']
    #allocation7 [shape = 's32[1]{0}', space=sflag, size = 0x4, scoped, tag = 'scoped memory for tpu_custom_call.1']
    #allocation8 [shape = 'u8[262144]{0}', space=vmem, size = 0x40000, scoped, tag = 'output window, operand 0']
    %7 = vsyncpa [#allocation4], 0
    %s8 = scalar_lea.sflag [#allocation4], 1
    %9 = vsyncpa %s8, 0
    %10 = vsyncpa [#allocation7], 0
    %11 = vsyncpa [#allocation5], 0
    %s12 = scalar_lea.sflag [#allocation5], 1
    %13 = vsyncpa %s12, 0
    loop: start=0, step=1, limit=10
    $region2: #{tpu_custom_call.1} parent=1 // loop_pre_header
      _
    $region3: #{tpu_custom_call.1} parent=1 // loop_header
      %s15 = sphi 0, %s19
      %p16 = scmp.ge.s32.totalorder %s15, 10
      %s22 = sphi 0, %s34
      %s23 = sphi 0, %s30
      %s24 = sphi 0, %s22
      %s25 = sphi 0, %s23
      %s26 = sphi 0, %s24
      %s27 = sphi 0, %s25
      %s39 = sphi 0, %s41
      %s42 = sphi 0, %s39
      %s43 = sphi 0, %s42
      %s59 = sphi 0, %s43
      %s63 = sphi 0, %s63
      %s65 = sphi 0, %s63
      %s66 = sphi 0, %s65
      %s80 = sphi 0, %s66
      %s86 = sphi 0, %s88
      %s89 = sphi 0, %s86
      %s90 = sphi 0, %s89
      %s106 = sphi 0, %s90
    $region4: #{tpu_custom_call.1} parent=1 // loop_header_branch
      %18 = sbr.rel (%p16) target = $region8
    $region5: #{tpu_custom_call.1} parent=1 // loop_body
      %s20 = ssub.s32 %s15, 1
      %s21 = ssub.s32 %s15, 2
      %s28 = sadd.s32 1, %s23
      %p29 = scmp.ge.s32.totalorder %s28, 4
      %s30 = scalar_select %p29, 0, %s28
      %s31 = sadd.s32 1, %s22
      %s32 = scalar_select %p29, %s31, %s22
      %p33 = scmp.ge.s32.totalorder %s32, 2
      %s34 = scalar_select %p33, 0, %s32
      %s35 = ssub.s32 %s22, %s34
      %s36 = ssub.s32 %s23, %s30
      %s37 = sor.u32 %s35, %s36
      %p38 = scmp.eq.s32.totalorder %s37, 0
      %s40 = sadd.s32 %s39, 1
      %s41 = scalar_select %p38, %s39, %s40
      %p44 = pneg %p38
      %p45 = scmp.eq.s32.totalorder %s15, 7
      %p46 = por %p44, %p45
      %p47 = scmp.ne.s32.totalorder %s39, %s42
      %p48 = scmp.eq.s32.totalorder %s15, 0
      %p49 = por %p47, %p48
      %p50 = scmp.ne.s32.totalorder %s39, %s42
      %p51 = scmp.eq.s32.totalorder %s20, 7
      %p52 = por %p50, %p51
      %p53 = scmp.ne.s32.totalorder %s42, %s43
      %p54 = scmp.eq.s32.totalorder %s20, 0
      %p55 = por %p53, %p54
      %p56 = scmp.ne.s32.totalorder %s42, %s43
      %p57 = scmp.eq.s32.totalorder %s21, 7
      %p58 = por %p56, %p57
      %p60 = scmp.ne.s32.totalorder %s43, %s59
      %p61 = scmp.eq.s32.totalorder %s21, 0
      %p62 = por %p60, %p61
      %s64 = sadd.s32 %s63, 1
      %p67 = scmp.eq.s32.totalorder %s15, 7
      %p68 = scmp.ne.s32.totalorder %s63, %s65
      %p69 = scmp.eq.s32.totalorder %s15, 0
      %p70 = por %p68, %p69
      %p71 = scmp.ne.s32.totalorder %s63, %s65
      %p72 = scmp.eq.s32.totalorder %s20, 7
      %p73 = por %p71, %p72
      %p74 = scmp.ne.s32.totalorder %s65, %s66
      %p75 = scmp.eq.s32.totalorder %s20, 0
      %p76 = por %p74, %p75
      %p77 = scmp.ne.s32.totalorder %s65, %s66
      %p78 = scmp.eq.s32.totalorder %s21, 7
      %p79 = por %p77, %p78
      %p81 = scmp.ne.s32.totalorder %s66, %s80
      %p82 = scmp.eq.s32.totalorder %s21, 0
      %p83 = por %p81, %p82
      %s84 = ssub.s32 %s22, %s34
      %p85 = scmp.eq.s32.totalorder %s84, 0
      %s87 = sadd.s32 %s86, 1
      %s88 = scalar_select %p85, %s86, %s87
      %p91 = pneg %p85
      %p92 = scmp.eq.s32.totalorder %s15, 7
      %p93 = por %p91, %p92
      %p94 = scmp.ne.s32.totalorder %s86, %s89
      %p95 = scmp.eq.s32.totalorder %s15, 0
      %p96 = por %p94, %p95
      %p97 = scmp.ne.s32.totalorder %s86, %s89
      %p98 = scmp.eq.s32.totalorder %s20, 7
      %p99 = por %p97, %p98
      %p100 = scmp.ne.s32.totalorder %s89, %s90
      %p101 = scmp.eq.s32.totalorder %s20, 0
      %p102 = por %p100, %p101
      %p103 = scmp.ne.s32.totalorder %s89, %s90
      %p104 = scmp.eq.s32.totalorder %s21, 7
      %p105 = por %p103, %p104
      %p107 = scmp.ne.s32.totalorder %s90, %s106
      %p108 = scmp.eq.s32.totalorder %s21, 0
      %p109 = por %p107, %p108
      %p110 = scmp.le.s32.totalorder 1, %s15
      %p111 = scmp.lt.s32.totalorder %s15, 9
      %p112 = pnand %p110, %p111
      %p113 = pneg %p112
      // Predicated region
      $region9: #{tpu_custom_call.1} parent=5 // pred_check
        _
      $region10: #{tpu_custom_call.1} parent=5 // pred_check_branch
        %115 = sbr.rel (%p112) target = $region12
      $region11: #{tpu_custom_call.1} parent=5 // pred_region
        %s116 = ssub.s32 %s15, 1
        // Predicated region
        $region13: #{tpu_custom_call.1} parent=11 // pred_check
          %p117 = pneg %p76
        $region14: #{tpu_custom_call.1} parent=11 // pred_check_branch
          %119 = sbr.rel (%p117) target = $region16
        $region15: #{tpu_custom_call.1} parent=11 // pred_region
          %s121 = ssub.s32 8192, 8192
          %122 = vsyncadd [#allocation7], %s121
          %s123 = sshll.u32 [#allocation6], 4
          %s124 = int_to_ptr.vmem [resolvable:$true] %s123
          %129 = dma.hbm_to_vmem [thread:$0]  %s1, 8192, %s124, [#allocation7], 64, 64, 4
        $region16: #{tpu_custom_call.1} parent=11 // pred_fallthru
          _
      $region12: #{tpu_custom_call.1} parent=5 // pred_fallthru
        _
      %p130 = scmp.lt.s32.totalorder %s15, 8
      // Predicated region
      $region17: #{tpu_custom_call.1} parent=5 // pred_check
        %p131 = pneg %p130
      $region18: #{tpu_custom_call.1} parent=5 // pred_check_branch
        %133 = sbr.rel (%p131) target = $region20
      $region19: #{tpu_custom_call.1} parent=5 // pred_region
        // Predicated region
        $region21: #{tpu_custom_call.1} parent=19 // pred_check
          %p134 = pneg %p49
        $region22: #{tpu_custom_call.1} parent=19 // pred_check_branch
          %136 = sbr.rel (%p134) target = $region24
        $region23: #{tpu_custom_call.1} parent=19 // pred_region
          %s137 = sand.u32 %s39, 1
          %s138 = scalar_lea.sflag [#allocation4], %s137
          %s139 = sand.u32 %s39, 1
          %s140 = smul.addr %s139, 512
          %s141 = scalar_lea.vmem [#allocation3], %s140
          %s142 = smul.u32 64, %s22
          %s143 = smul.u32 2, %s23
          %s145 = ssub.s32 8192, 8192
          %146 = vsyncadd %s138, %s145
          %s147 = smul.addr %s142, 8
          %s148 = sadd.s32 %s143, %s147
          %s149 = smul.addr %s148, 64
          %s150 = scalar_lea.hbm %s0, %s149
          %s151 = sshll.u32 %s141, 4
          %s152 = int_to_ptr.vmem [resolvable:$true] %s151
          %157 = dma.hbm_to_vmem [thread:$0]  %s150, 8192, %s152, %s138, 512, 128, 8
        $region24: #{tpu_custom_call.1} parent=19 // pred_fallthru
          _
      $region20: #{tpu_custom_call.1} parent=5 // pred_fallthru
        _
      %p158 = scmp.le.s32.totalorder 1, %s15
      %p159 = scmp.lt.s32.totalorder %s15, 9
      %p160 = pnand %p158, %p159
      %p161 = pneg %p160
      // Predicated region
      $region25: #{tpu_custom_call.1} parent=5 // pred_check
        _
      $region26: #{tpu_custom_call.1} parent=5 // pred_check_branch
        %163 = sbr.rel (%p160) target = $region28
      $region27: #{tpu_custom_call.1} parent=5 // pred_region
        %s164 = ssub.s32 %s15, 1
        %s165 = sand.u32 %s42, 1
        %s166 = scalar_lea.sflag [#allocation4], %s165
        %s167 = sand.u32 %s42, 1
        %s168 = smul.addr %s167, 512
        %s169 = scalar_lea.vmem [#allocation3], %s168
        // Predicated region
        $region29: #{tpu_custom_call.1} parent=27 // pred_check
          %p170 = pneg %p55
        $region30: #{tpu_custom_call.1} parent=27 // pred_check_branch
          %172 = sbr.rel (%p170) target = $region32
        $region31: #{tpu_custom_call.1} parent=27 // pred_region
          %173 = dma.done %s166, 8192
        $region32: #{tpu_custom_call.1} parent=27 // pred_fallthru
          _
        // Predicated region
        $region33: #{tpu_custom_call.1} parent=27 // pred_check
          %p174 = pneg %p76
        $region34: #{tpu_custom_call.1} parent=27 // pred_check_branch
          %176 = sbr.rel (%p174) target = $region36
        $region35: #{tpu_custom_call.1} parent=27 // pred_region
          %177 = dma.done [#allocation7], 8192
        $region36: #{tpu_custom_call.1} parent=27 // pred_fallthru
          _
        %s178 = sand.u32 %s42, 1
        %s179 = scalar_lea.sflag [#allocation4], %s178
        %s180 = sand.u32 %s42, 1
        %s181 = smul.addr %s180, 512
        %s182 = scalar_lea.vmem [#allocation3], %s181
        %p183 = pneg %p55
        %p184 = pneg %p52
        %p185 = pneg %p76
        %p186 = pneg %p73
        %p187 = pneg %p102
        %p188 = pneg %p99
        %s189 = sand.u32 %s89, 1
        %s190 = scalar_lea.sflag [#allocation5], %s189
        %s191 = sand.u32 %s89, 1
        %s192 = smul.addr %s191, 256
        %s193 = scalar_lea.vmem [#allocation8], %s192
        %s194 = smul.u32 64, %s24
        %s195 = smul.u32 2, %s25
        %s196 = smul.u32 64, %s24
        %p198 = scmp.eq.s32.totalorder %s25, 0
        // Predicated region
        $region37: #{tpu_custom_call.1} parent=27 // pred_check
          %p199 = pneg %p198
        $region38: #{tpu_custom_call.1} parent=27 // pred_check_branch
          %201 = sbr.rel (%p199) target = $region40
        $region39: #{tpu_custom_call.1} parent=27 // pred_region
          %202 = vst [vmem:[#allocation2] sm:$0xff] 0.0
          %203 = vst [vmem:[#allocation2 + $0x8] sm:$0xff] 0.0
          %204 = vst [vmem:[#allocation2 + $0x10] sm:$0xff] 0.0
          %205 = vst [vmem:[#allocation2 + $0x18] sm:$0xff] 0.0
          %206 = vst [vmem:[#allocation2 + $0x20] sm:$0xff] 0.0
          %207 = vst [vmem:[#allocation2 + $0x28] sm:$0xff] 0.0
          %208 = vst [vmem:[#allocation2 + $0x30] sm:$0xff] 0.0
          %209 = vst [vmem:[#allocation2 + $0x38] sm:$0xff] 0.0
          %210 = vst [vmem:[#allocation2 + $0x40] sm:$0xff] 0.0
          %211 = vst [vmem:[#allocation2 + $0x48] sm:$0xff] 0.0
          %212 = vst [vmem:[#allocation2 + $0x50] sm:$0xff] 0.0
          %213 = vst [vmem:[#allocation2 + $0x58] sm:$0xff] 0.0
          %214 = vst [vmem:[#allocation2 + $0x60] sm:$0xff] 0.0
          %215 = vst [vmem:[#allocation2 + $0x68] sm:$0xff] 0.0
          %216 = vst [vmem:[#allocation2 + $0x70] sm:$0xff] 0.0
          %217 = vst [vmem:[#allocation2 + $0x78] sm:$0xff] 0.0
          %218 = vst [vmem:[#allocation2 + $0x80] sm:$0xff] 0.0
          %219 = vst [vmem:[#allocation2 + $0x88] sm:$0xff] 0.0
          %220 = vst [vmem:[#allocation2 + $0x90] sm:$0xff] 0.0
          %221 = vst [vmem:[#allocation2 + $0x98] sm:$0xff] 0.0
          %222 = vst [vmem:[#allocation2 + $0xa0] sm:$0xff] 0.0
          %223 = vst [vmem:[#allocation2 + $0xa8] sm:$0xff] 0.0
          %224 = vst [vmem:[#allocation2 + $0xb0] sm:$0xff] 0.0
          %225 = vst [vmem:[#allocation2 + $0xb8] sm:$0xff] 0.0
          %226 = vst [vmem:[#allocation2 + $0xc0] sm:$0xff] 0.0
          %227 = vst [vmem:[#allocation2 + $0xc8] sm:$0xff] 0.0
          %228 = vst [vmem:[#allocation2 + $0xd0] sm:$0xff] 0.0
          %229 = vst [vmem:[#allocation2 + $0xd8] sm:$0xff] 0.0
          %230 = vst [vmem:[#allocation2 + $0xe0] sm:$0xff] 0.0
          %231 = vst [vmem:[#allocation2 + $0xe8] sm:$0xff] 0.0
          %232 = vst [vmem:[#allocation2 + $0xf0] sm:$0xff] 0.0
          %233 = vst [vmem:[#allocation2 + $0xf8] sm:$0xff] 0.0
          %234 = vst [vmem:[#allocation2 + $0x100] sm:$0xff] 0.0
          %235 = vst [vmem:[#allocation2 + $0x108] sm:$0xff] 0.0
          %236 = vst [vmem:[#allocation2 + $0x110] sm:$0xff] 0.0
          %237 = vst [vmem:[#allocation2 + $0x118] sm:$0xff] 0.0
          %238 = vst [vmem:[#allocation2 + $0x120] sm:$0xff] 0.0
          %239 = vst [vmem:[#allocation2 + $0x128] sm:$0xff] 0.0
          %240 = vst [vmem:[#allocation2 + $0x130] sm:$0xff] 0.0
          %241 = vst [vmem:[#allocation2 + $0x138] sm:$0xff] 0.0
          %242 = vst [vmem:[#allocation2 + $0x140] sm:$0xff] 0.0
          %243 = vst [vmem:[#allocation2 + $0x148] sm:$0xff] 0.0
          %244 = vst [vmem:[#allocation2 + $0x150] sm:$0xff] 0.0
          %245 = vst [vmem:[#allocation2 + $0x158] sm:$0xff] 0.0
          %246 = vst [vmem:[#allocation2 + $0x160] sm:$0xff] 0.0
          %247 = vst [vmem:[#allocation2 + $0x168] sm:$0xff] 0.0
          %248 = vst [vmem:[#allocation2 + $0x170] sm:$0xff] 0.0
          %249 = vst [vmem:[#allocation2 + $0x178] sm:$0xff] 0.0
          %250 = vst [vmem:[#allocation2 + $0x180] sm:$0xff] 0.0
          %251 = vst [vmem:[#allocation2 + $0x188] sm:$0xff] 0.0
          %252 = vst [vmem:[#allocation2 + $0x190] sm:$0xff] 0.0
          %253 = vst [vmem:[#allocation2 + $0x198] sm:$0xff] 0.0
          %254 = vst [vmem:[#allocation2 + $0x1a0] sm:$0xff] 0.0
          %255 = vst [vmem:[#allocation2 + $0x1a8] sm:$0xff] 0.0
          %256 = vst [vmem:[#allocation2 + $0x1b0] sm:$0xff] 0.0
          %257 = vst [vmem:[#allocation2 + $0x1b8] sm:$0xff] 0.0
          %258 = vst [vmem:[#allocation2 + $0x1c0] sm:$0xff] 0.0
          %259 = vst [vmem:[#allocation2 + $0x1c8] sm:$0xff] 0.0
          %260 = vst [vmem:[#allocation2 + $0x1d0] sm:$0xff] 0.0
          %261 = vst [vmem:[#allocation2 + $0x1d8] sm:$0xff] 0.0
          %262 = vst [vmem:[#allocation2 + $0x1e0] sm:$0xff] 0.0
          %263 = vst [vmem:[#allocation2 + $0x1e8] sm:$0xff] 0.0
          %264 = vst [vmem:[#allocation2 + $0x1f0] sm:$0xff] 0.0
          %265 = vst [vmem:[#allocation2 + $0x1f8] sm:$0xff] 0.0
        $region40: #{tpu_custom_call.1} parent=27 // pred_fallthru
          _
        %s266 = smul.u32 %s25, 256
        %s267 = sshra.s32 %s266, 3
        %s268 = sand.u32 %s266, 7
        %s269 = smul.addr %s267, 4
        %s270 = scalar_lea.vmem [#allocation6], %s269
        %v271 = vld [vmem:[%s270] sm:$0xf]
        %v272 = vld [vmem:[%s270 + $0x4] sm:$0xf]
        %v273 = vld [vmem:[%s270 + $0x8] sm:$0xf]
        %v274 = vld [vmem:[%s270 + $0xc] sm:$0xf]
        %v275 = vld [vmem:[%s270 + $0x10] sm:$0xf]
        %v276 = vld [vmem:[%s270 + $0x14] sm:$0xf]
        %v277 = vld [vmem:[%s270 + $0x18] sm:$0xf]
        %v278 = vld [vmem:[%s270 + $0x1c] sm:$0xf]
        %v279 = vld [vmem:[%s270 + $0x20] sm:$0xf]
        %v280 = vld [vmem:[%s270 + $0x24] sm:$0xf]
        %v281 = vld [vmem:[%s270 + $0x28] sm:$0xf]
        %v282 = vld [vmem:[%s270 + $0x2c] sm:$0xf]
        %v283 = vld [vmem:[%s270 + $0x30] sm:$0xf]
        %v284 = vld [vmem:[%s270 + $0x34] sm:$0xf]
        %v285 = vld [vmem:[%s270 + $0x38] sm:$0xf]
        %v286 = vld [vmem:[%s270 + $0x3c] sm:$0xf]
        %v287 = vld [vmem:[%s270 + $0x40] sm:$0xf]
        %v288 = vld [vmem:[%s270 + $0x44] sm:$0xf]
        %v289 = vld [vmem:[%s270 + $0x48] sm:$0xf]
        %v290 = vld [vmem:[%s270 + $0x4c] sm:$0xf]
        %v291 = vld [vmem:[%s270 + $0x50] sm:$0xf]
        %v292 = vld [vmem:[%s270 + $0x54] sm:$0xf]
        %v293 = vld [vmem:[%s270 + $0x58] sm:$0xf]
        %v294 = vld [vmem:[%s270 + $0x5c] sm:$0xf]
        %v295 = vld [vmem:[%s270 + $0x60] sm:$0xf]
        %v296 = vld [vmem:[%s270 + $0x64] sm:$0xf]
        %v297 = vld [vmem:[%s270 + $0x68] sm:$0xf]
        %v298 = vld [vmem:[%s270 + $0x6c] sm:$0xf]
        %v299 = vld [vmem:[%s270 + $0x70] sm:$0xf]
        %v300 = vld [vmem:[%s270 + $0x74] sm:$0xf]
        %v301 = vld [vmem:[%s270 + $0x78] sm:$0xf]
        %v302 = vld [vmem:[%s270 + $0x7c] sm:$0xf]
        %v303 = vld [vmem:[#allocation2] sm:$0xff]
        %v304 = vld [vmem:[#allocation2 + $0x8] sm:$0xff]
        %v305 = vld [vmem:[#allocation2 + $0x10] sm:$0xff]
        %v306 = vld [vmem:[#allocation2 + $0x18] sm:$0xff]
        %v307 = vld [vmem:[#allocation2 + $0x20] sm:$0xff]
        %v308 = vld [vmem:[#allocation2 + $0x28] sm:$0xff]
        %v309 = vld [vmem:[#allocation2 + $0x30] sm:$0xff]
        %v310 = vld [vmem:[#allocation2 + $0x38] sm:$0xff]
        %v311 = vld [vmem:[#allocation2 + $0x40] sm:$0xff]
        %v312 = vld [vmem:[#allocation2 + $0x48] sm:$0xff]
        %v313 = vld [vmem:[#allocation2 + $0x50] sm:$0xff]
        %v314 = vld [vmem:[#allocation2 + $0x58] sm:$0xff]
        %v315 = vld [vmem:[#allocation2 + $0x60] sm:$0xff]
        %v316 = vld [vmem:[#allocation2 + $0x68] sm:$0xff]
        %v317 = vld [vmem:[#allocation2 + $0x70] sm:$0xff]
        %v318 = vld [vmem:[#allocation2 + $0x78] sm:$0xff]
        %v319 = vld [vmem:[#allocation2 + $0x80] sm:$0xff]
        %v320 = vld [vmem:[#allocation2 + $0x88] sm:$0xff]
        %v321 = vld [vmem:[#allocation2 + $0x90] sm:$0xff]
        %v322 = vld [vmem:[#allocation2 + $0x98] sm:$0xff]
        %v323 = vld [vmem:[#allocation2 + $0xa0] sm:$0xff]
        %v324 = vld [vmem:[#allocation2 + $0xa8] sm:$0xff]
        %v325 = vld [vmem:[#allocation2 + $0xb0] sm:$0xff]
        %v326 = vld [vmem:[#allocation2 + $0xb8] sm:$0xff]
        %v327 = vld [vmem:[#allocation2 + $0xc0] sm:$0xff]
        %v328 = vld [vmem:[#allocation2 + $0xc8] sm:$0xff]
        %v329 = vld [vmem:[#allocation2 + $0xd0] sm:$0xff]
        %v330 = vld [vmem:[#allocation2 + $0xd8] sm:$0xff]
        %v331 = vld [vmem:[#allocation2 + $0xe0] sm:$0xff]
        %v332 = vld [vmem:[#allocation2 + $0xe8] sm:$0xff]
        %v333 = vld [vmem:[#allocation2 + $0xf0] sm:$0xff]
        %v334 = vld [vmem:[#allocation2 + $0xf8] sm:$0xff]
        %v335 = vld [vmem:[#allocation2 + $0x100] sm:$0xff]
        %v336 = vld [vmem:[#allocation2 + $0x108] sm:$0xff]
        %v337 = vld [vmem:[#allocation2 + $0x110] sm:$0xff]
        %v338 = vld [vmem:[#allocation2 + $0x118] sm:$0xff]
        %v339 = vld [vmem:[#allocation2 + $0x120] sm:$0xff]
        %v340 = vld [vmem:[#allocation2 + $0x128] sm:$0xff]
        %v341 = vld [vmem:[#allocation2 + $0x130] sm:$0xff]
        %v342 = vld [vmem:[#allocation2 + $0x138] sm:$0xff]
        %v343 = vld [vmem:[#allocation2 + $0x140] sm:$0xff]
        %v344 = vld [vmem:[#allocation2 + $0x148] sm:$0xff]
        %v345 = vld [vmem:[#allocation2 + $0x150] sm:$0xff]
        %v346 = vld [vmem:[#allocation2 + $0x158] sm:$0xff]
        %v347 = vld [vmem:[#allocation2 + $0x160] sm:$0xff]
        %v348 = vld [vmem:[#allocation2 + $0x168] sm:$0xff]
        %v349 = vld [vmem:[#allocation2 + $0x170] sm:$0xff]
        %v350 = vld [vmem:[#allocation2 + $0x178] sm:$0xff]
        %v351 = vld [vmem:[#allocation2 + $0x180] sm:$0xff]
        %v352 = vld [vmem:[#allocation2 + $0x188] sm:$0xff]
        %v353 = vld [vmem:[#allocation2 + $0x190] sm:$0xff]
        %v354 = vld [vmem:[#allocation2 + $0x198] sm:$0xff]
        %v355 = vld [vmem:[#allocation2 + $0x1a0] sm:$0xff]
        %v356 = vld [vmem:[#allocation2 + $0x1a8] sm:$0xff]
        %v357 = vld [vmem:[#allocation2 + $0x1b0] sm:$0xff]
        %v358 = vld [vmem:[#allocation2 + $0x1b8] sm:$0xff]
        %v359 = vld [vmem:[#allocation2 + $0x1c0] sm:$0xff]
        %v360 = vld [vmem:[#allocation2 + $0x1c8] sm:$0xff]
        %v361 = vld [vmem:[#allocation2 + $0x1d0] sm:$0xff]
        %v362 = vld [vmem:[#allocation2 + $0x1d8] sm:$0xff]
        %v363 = vld [vmem:[#allocation2 + $0x1e0] sm:$0xff]
        %v364 = vld [vmem:[#allocation2 + $0x1e8] sm:$0xff]
        %v365 = vld [vmem:[#allocation2 + $0x1f0] sm:$0xff]
        %v366 = vld [vmem:[#allocation2 + $0x1f8] sm:$0xff]
        %v367 = vld [vmem:[%s169] sm:$0xff]
        %v368 = vld [vmem:[%s169 + $0x8] sm:$0xff]
        %v369 = vld [vmem:[%s169 + $0x10] sm:$0xff]
        %v370 = vld [vmem:[%s169 + $0x18] sm:$0xff]
        %v371 = vld [vmem:[%s169 + $0x20] sm:$0xff]
        %v372 = vld [vmem:[%s169 + $0x28] sm:$0xff]
        %v373 = vld [vmem:[%s169 + $0x30] sm:$0xff]
        %v374 = vld [vmem:[%s169 + $0x38] sm:$0xff]
        %v375 = vld [vmem:[%s169 + $0x40] sm:$0xff]
        %v376 = vld [vmem:[%s169 + $0x48] sm:$0xff]
        %v377 = vld [vmem:[%s169 + $0x50] sm:$0xff]
        %v378 = vld [vmem:[%s169 + $0x58] sm:$0xff]
        %v379 = vld [vmem:[%s169 + $0x60] sm:$0xff]
        %v380 = vld [vmem:[%s169 + $0x68] sm:$0xff]
        %v381 = vld [vmem:[%s169 + $0x70] sm:$0xff]
        %v382 = vld [vmem:[%s169 + $0x78] sm:$0xff]
        %v383 = vld [vmem:[%s169 + $0x80] sm:$0xff]
        %v384 = vld [vmem:[%s169 + $0x88] sm:$0xff]
        %v385 = vld [vmem:[%s169 + $0x90] sm:$0xff]
        %v386 = vld [vmem:[%s169 + $0x98] sm:$0xff]
        %v387 = vld [vmem:[%s169 + $0xa0] sm:$0xff]
        %v388 = vld [vmem:[%s169 + $0xa8] sm:$0xff]
        %v389 = vld [vmem:[%s169 + $0xb0] sm:$0xff]
        %v390 = vld [vmem:[%s169 + $0xb8] sm:$0xff]
        %v391 = vld [vmem:[%s169 + $0xc0] sm:$0xff]
        %v392 = vld [vmem:[%s169 + $0xc8] sm:$0xff]
        %v393 = vld [vmem:[%s169 + $0xd0] sm:$0xff]
        %v394 = vld [vmem:[%s169 + $0xd8] sm:$0xff]
        %v395 = vld [vmem:[%s169 + $0xe0] sm:$0xff]
        %v396 = vld [vmem:[%s169 + $0xe8] sm:$0xff]
        %v397 = vld [vmem:[%s169 + $0xf0] sm:$0xff]
        %v398 = vld [vmem:[%s169 + $0xf8] sm:$0xff]
        %v399 = vld [vmem:[%s169 + $0x100] sm:$0xff]
        %v400 = vld [vmem:[%s169 + $0x108] sm:$0xff]
        %v401 = vld [vmem:[%s169 + $0x110] sm:$0xff]
        %v402 = vld [vmem:[%s169 + $0x118] sm:$0xff]
        %v403 = vld [vmem:[%s169 + $0x120] sm:$0xff]
        %v404 = vld [vmem:[%s169 + $0x128] sm:$0xff]
        %v405 = vld [vmem:[%s169 + $0x130] sm:$0xff]
        %v406 = vld [vmem:[%s169 + $0x138] sm:$0xff]
        %v407 = vld [vmem:[%s169 + $0x140] sm:$0xff]
        %v408 = vld [vmem:[%s169 + $0x148] sm:$0xff]
        %v409 = vld [vmem:[%s169 + $0x150] sm:$0xff]
        %v410 = vld [vmem:[%s169 + $0x158] sm:$0xff]
        %v411 = vld [vmem:[%s169 + $0x160] sm:$0xff]
        %v412 = vld [vmem:[%s169 + $0x168] sm:$0xff]
        %v413 = vld [vmem:[%s169 + $0x170] sm:$0xff]
        %v414 = vld [vmem:[%s169 + $0x178] sm:$0xff]
        %v415 = vld [vmem:[%s169 + $0x180] sm:$0xff]
        %v416 = vld [vmem:[%s169 + $0x188] sm:$0xff]
        %v417 = vld [vmem:[%s169 + $0x190] sm:$0xff]
        %v418 = vld [vmem:[%s169 + $0x198] sm:$0xff]
        %v419 = vld [vmem:[%s169 + $0x1a0] sm:$0xff]
        %v420 = vld [vmem:[%s169 + $0x1a8] sm:$0xff]
        %v421 = vld [vmem:[%s169 + $0x1b0] sm:$0xff]
        %v422 = vld [vmem:[%s169 + $0x1b8] sm:$0xff]
        %v423 = vld [vmem:[%s169 + $0x1c0] sm:$0xff]
        %v424 = vld [vmem:[%s169 + $0x1c8] sm:$0xff]
        %v425 = vld [vmem:[%s169 + $0x1d0] sm:$0xff]
        %v426 = vld [vmem:[%s169 + $0x1d8] sm:$0xff]
        %v427 = vld [vmem:[%s169 + $0x1e0] sm:$0xff]
        %v428 = vld [vmem:[%s169 + $0x1e8] sm:$0xff]
        %v429 = vld [vmem:[%s169 + $0x1f0] sm:$0xff]
        %v430 = vld [vmem:[%s169 + $0x1f8] sm:$0xff]
        %v495 = vunpack.c.l.b16 %v367
        %v496 = vunpack.c.h.b16 %v367
        %v497 = vunpack.c.l.b16 %v368
        %v498 = vunpack.c.h.b16 %v368
        %v499 = vunpack.c.l.b16 %v369
        %v500 = vunpack.c.h.b16 %v369
        %v501 = vunpack.c.l.b16 %v370
        %v502 = vunpack.c.h.b16 %v370
        %v503 = vunpack.c.l.b16 %v371
        %v504 = vunpack.c.h.b16 %v371
        %v505 = vunpack.c.l.b16 %v372
        %v506 = vunpack.c.h.b16 %v372
        %v507 = vunpack.c.l.b16 %v373
        %v508 = vunpack.c.h.b16 %v373
        %v509 = vunpack.c.l.b16 %v374
        %v510 = vunpack.c.h.b16 %v374
        %v511 = vunpack.c.l.b16 %v375
        %v512 = vunpack.c.h.b16 %v375
        %v513 = vunpack.c.l.b16 %v376
        %v514 = vunpack.c.h.b16 %v376
        %v515 = vunpack.c.l.b16 %v377
        %v516 = vunpack.c.h.b16 %v377
        %v517 = vunpack.c.l.b16 %v378
        %v518 = vunpack.c.h.b16 %v378
        %v519 = vunpack.c.l.b16 %v379
        %v520 = vunpack.c.h.b16 %v379
        %v521 = vunpack.c.l.b16 %v380
        %v522 = vunpack.c.h.b16 %v380
        %v523 = vunpack.c.l.b16 %v381
        %v524 = vunpack.c.h.b16 %v381
        %v525 = vunpack.c.l.b16 %v382
        %v526 = vunpack.c.h.b16 %v382
        %v527 = vunpack.c.l.b16 %v383
        %v528 = vunpack.c.h.b16 %v383
        %v529 = vunpack.c.l.b16 %v384
        %v530 = vunpack.c.h.b16 %v384
        %v531 = vunpack.c.l.b16 %v385
        %v532 = vunpack.c.h.b16 %v385
        %v533 = vunpack.c.l.b16 %v386
        %v534 = vunpack.c.h.b16 %v386
        %v535 = vunpack.c.l.b16 %v387
        %v536 = vunpack.c.h.b16 %v387
        %v537 = vunpack.c.l.b16 %v388
        %v538 = vunpack.c.h.b16 %v388
        %v539 = vunpack.c.l.b16 %v389
        %v540 = vunpack.c.h.b16 %v389
        %v541 = vunpack.c.l.b16 %v390
        %v542 = vunpack.c.h.b16 %v390
        %v543 = vunpack.c.l.b16 %v391
        %v544 = vunpack.c.h.b16 %v391
        %v545 = vunpack.c.l.b16 %v392
        %v546 = vunpack.c.h.b16 %v392
        %v547 = vunpack.c.l.b16 %v393
        %v548 = vunpack.c.h.b16 %v393
        %v549 = vunpack.c.l.b16 %v394
        %v550 = vunpack.c.h.b16 %v394
        %v551 = vunpack.c.l.b16 %v395
        %v552 = vunpack.c.h.b16 %v395
        %v553 = vunpack.c.l.b16 %v396
        %v554 = vunpack.c.h.b16 %v396
        %v555 = vunpack.c.l.b16 %v397
        %v556 = vunpack.c.h.b16 %v397
        %v557 = vunpack.c.l.b16 %v398
        %v558 = vunpack.c.h.b16 %v398
        %v559 = vunpack.c.l.b16 %v399
        %v560 = vunpack.c.h.b16 %v399
        %v561 = vunpack.c.l.b16 %v400
        %v562 = vunpack.c.h.b16 %v400
        %v563 = vunpack.c.l.b16 %v401
        %v564 = vunpack.c.h.b16 %v401
        %v565 = vunpack.c.l.b16 %v402
        %v566 = vunpack.c.h.b16 %v402
        %v567 = vunpack.c.l.b16 %v403
        %v568 = vunpack.c.h.b16 %v403
        %v569 = vunpack.c.l.b16 %v404
        %v570 = vunpack.c.h.b16 %v404
        %v571 = vunpack.c.l.b16 %v405
        %v572 = vunpack.c.h.b16 %v405
        %v573 = vunpack.c.l.b16 %v406
        %v574 = vunpack.c.h.b16 %v406
        %v575 = vunpack.c.l.b16 %v407
        %v576 = vunpack.c.h.b16 %v407
        %v577 = vunpack.c.l.b16 %v408
        %v578 = vunpack.c.h.b16 %v408
        %v579 = vunpack.c.l.b16 %v409
        %v580 = vunpack.c.h.b16 %v409
        %v581 = vunpack.c.l.b16 %v410
        %v582 = vunpack.c.h.b16 %v410
        %v583 = vunpack.c.l.b16 %v411
        %v584 = vunpack.c.h.b16 %v411
        %v585 = vunpack.c.l.b16 %v412
        %v586 = vunpack.c.h.b16 %v412
        %v587 = vunpack.c.l.b16 %v413
        %v588 = vunpack.c.h.b16 %v413
        %v589 = vunpack.c.l.b16 %v414
        %v590 = vunpack.c.h.b16 %v414
        %v591 = vunpack.c.l.b16 %v415
        %v592 = vunpack.c.h.b16 %v415
        %v593 = vunpack.c.l.b16 %v416
        %v594 = vunpack.c.h.b16 %v416
        %v595 = vunpack.c.l.b16 %v417
        %v596 = vunpack.c.h.b16 %v417
        %v597 = vunpack.c.l.b16 %v418
        %v598 = vunpack.c.h.b16 %v418
        %v599 = vunpack.c.l.b16 %v419
        %v600 = vunpack.c.h.b16 %v419
        %v601 = vunpack.c.l.b16 %v420
        %v602 = vunpack.c.h.b16 %v420
        %v603 = vunpack.c.l.b16 %v421
        %v604 = vunpack.c.h.b16 %v421
        %v605 = vunpack.c.l.b16 %v422
        %v606 = vunpack.c.h.b16 %v422
        %v607 = vunpack.c.l.b16 %v423
        %v608 = vunpack.c.h.b16 %v423
        %v609 = vunpack.c.l.b16 %v424
        %v610 = vunpack.c.h.b16 %v424
        %v611 = vunpack.c.l.b16 %v425
        %v612 = vunpack.c.h.b16 %v425
        %v613 = vunpack.c.l.b16 %v426
        %v614 = vunpack.c.h.b16 %v426
        %v615 = vunpack.c.l.b16 %v427
        %v616 = vunpack.c.h.b16 %v427
        %v617 = vunpack.c.l.b16 %v428
        %v618 = vunpack.c.h.b16 %v428
        %v619 = vunpack.c.l.b16 %v429
        %v620 = vunpack.c.h.b16 %v429
        %v621 = vunpack.c.l.b16 %v430
        %v622 = vunpack.c.h.b16 %v430
        %v623 = vpack.c.b16 %v497, %v495
        %v624 = vpack.c.b16 %v498, %v496
        %v625 = vpack.c.b16 %v501, %v499
        %v626 = vpack.c.b16 %v502, %v500
        %v627 = vpack.c.b16 %v505, %v503
        %v628 = vpack.c.b16 %v506, %v504
        %v629 = vpack.c.b16 %v509, %v507
        %v630 = vpack.c.b16 %v510, %v508
        %v631 = vpack.c.b16 %v513, %v511
        %v632 = vpack.c.b16 %v514, %v512
        %v633 = vpack.c.b16 %v517, %v515
        %v634 = vpack.c.b16 %v518, %v516
        %v635 = vpack.c.b16 %v521, %v519
        %v636 = vpack.c.b16 %v522, %v520
        %v637 = vpack.c.b16 %v525, %v523
        %v638 = vpack.c.b16 %v526, %v524
        %v639 = vpack.c.b16 %v529, %v527
        %v640 = vpack.c.b16 %v530, %v528
        %v641 = vpack.c.b16 %v533, %v531
        %v642 = vpack.c.b16 %v534, %v532
        %v643 = vpack.c.b16 %v537, %v535
        %v644 = vpack.c.b16 %v538, %v536
        %v645 = vpack.c.b16 %v541, %v539
        %v646 = vpack.c.b16 %v542, %v540
        %v647 = vpack.c.b16 %v545, %v543
        %v648 = vpack.c.b16 %v546, %v544
        %v649 = vpack.c.b16 %v549, %v547
        %v650 = vpack.c.b16 %v550, %v548
        %v651 = vpack.c.b16 %v553, %v551
        %v652 = vpack.c.b16 %v554, %v552
        %v653 = vpack.c.b16 %v557, %v555
        %v654 = vpack.c.b16 %v558, %v556
        %v655 = vpack.c.b16 %v561, %v559
        %v656 = vpack.c.b16 %v562, %v560
        %v657 = vpack.c.b16 %v565, %v563
        %v658 = vpack.c.b16 %v566, %v564
        %v659 = vpack.c.b16 %v569, %v567
        %v660 = vpack.c.b16 %v570, %v568
        %v661 = vpack.c.b16 %v573, %v571
        %v662 = vpack.c.b16 %v574, %v572
        %v663 = vpack.c.b16 %v577, %v575
        %v664 = vpack.c.b16 %v578, %v576
        %v665 = vpack.c.b16 %v581, %v579
        %v666 = vpack.c.b16 %v582, %v580
        %v667 = vpack.c.b16 %v585, %v583
        %v668 = vpack.c.b16 %v586, %v584
        %v669 = vpack.c.b16 %v589, %v587
        %v670 = vpack.c.b16 %v590, %v588
        %v671 = vpack.c.b16 %v593, %v591
        %v672 = vpack.c.b16 %v594, %v592
        %v673 = vpack.c.b16 %v597, %v595
        %v674 = vpack.c.b16 %v598, %v596
        %v675 = vpack.c.b16 %v601, %v599
        %v676 = vpack.c.b16 %v602, %v600
        %v677 = vpack.c.b16 %v605, %v603
        %v678 = vpack.c.b16 %v606, %v604
        %v679 = vpack.c.b16 %v609, %v607
        %v680 = vpack.c.b16 %v610, %v608
        %v681 = vpack.c.b16 %v613, %v611
        %v682 = vpack.c.b16 %v614, %v612
        %v683 = vpack.c.b16 %v617, %v615
        %v684 = vpack.c.b16 %v618, %v616
        %v685 = vpack.c.b16 %v621, %v619
        %v686 = vpack.c.b16 %v622, %v620
        %v783 = vunpack.c.l.b16 %v271
        %v784 = vunpack.c.l.b16 %v272
        %v785 = vunpack.c.l.b16 %v273
        %v786 = vunpack.c.l.b16 %v274
        %v787 = vunpack.c.l.b16 %v275
        %v788 = vunpack.c.l.b16 %v276
        %v789 = vunpack.c.l.b16 %v277
        %v790 = vunpack.c.l.b16 %v278
        %v791 = vunpack.c.l.b16 %v279
        %v792 = vunpack.c.l.b16 %v280
        %v793 = vunpack.c.l.b16 %v281
        %v794 = vunpack.c.l.b16 %v282
        %v795 = vunpack.c.l.b16 %v283
        %v796 = vunpack.c.l.b16 %v284
        %v797 = vunpack.c.l.b16 %v285
        %v798 = vunpack.c.l.b16 %v286
        %v799 = vunpack.c.l.b16 %v287
        %v800 = vunpack.c.l.b16 %v288
        %v801 = vunpack.c.l.b16 %v289
        %v802 = vunpack.c.l.b16 %v290
        %v803 = vunpack.c.l.b16 %v291
        %v804 = vunpack.c.l.b16 %v292
        %v805 = vunpack.c.l.b16 %v293
        %v806 = vunpack.c.l.b16 %v294
        %v807 = vunpack.c.l.b16 %v295
        %v808 = vunpack.c.l.b16 %v296
        %v809 = vunpack.c.l.b16 %v297
        %v810 = vunpack.c.l.b16 %v298
        %v811 = vunpack.c.l.b16 %v299
        %v812 = vunpack.c.l.b16 %v300
        %v813 = vunpack.c.l.b16 %v301
        %v814 = vunpack.c.l.b16 %v302
        %v815 = vpack.c.b16 %v784, %v783
        %v816 = vpack.c.b16 %v786, %v785
        %v817 = vpack.c.b16 %v788, %v787
        %v818 = vpack.c.b16 %v790, %v789
        %v819 = vpack.c.b16 %v792, %v791
        %v820 = vpack.c.b16 %v794, %v793
        %v821 = vpack.c.b16 %v796, %v795
        %v822 = vpack.c.b16 %v798, %v797
        %v823 = vpack.c.b16 %v800, %v799
        %v824 = vpack.c.b16 %v802, %v801
        %v825 = vpack.c.b16 %v804, %v803
        %v826 = vpack.c.b16 %v806, %v805
        %v827 = vpack.c.b16 %v808, %v807
        %v828 = vpack.c.b16 %v810, %v809
        %v829 = vpack.c.b16 %v812, %v811
        %v830 = vpack.c.b16 %v814, %v813
        %847 = vmatprep.subr.bf16.mxu0 0
        %848 = vmatpush1.bf16.msra.mxu0 %v815
        %849 = vmatprep.subr.bf16.mxu0 0
        %850 = vmatpush1.bf16.msra.mxu0 %v816
        %851 = vmatprep.subr.bf16.mxu0 0
        %852 = vmatpush1.bf16.msra.mxu0 %v817
        %853 = vmatprep.subr.bf16.mxu0 0
        %854 = vmatpush1.bf16.msra.mxu0 %v818
        %855 = vmatprep.subr.bf16.mxu0 0
        %856 = vmatpush1.bf16.msra.mxu0 %v819
        %857 = vmatprep.subr.bf16.mxu0 0
        %858 = vmatpush1.bf16.msra.mxu0 %v820
        %859 = vmatprep.subr.bf16.mxu0 0
        %860 = vmatpush1.bf16.msra.mxu0 %v821
        %861 = vmatprep.subr.bf16.mxu0 0
        %862 = vmatpush1.bf16.msra.mxu0 %v822
        %863 = vmatprep.subr.bf16.mxu0 0
        %864 = vmatpush1.bf16.msra.mxu0 %v823
        %865 = vmatprep.subr.bf16.mxu0 0
        %866 = vmatpush1.bf16.msra.mxu0 %v824
        %867 = vmatprep.subr.bf16.mxu0 0
        %868 = vmatpush1.bf16.msra.mxu0 %v825
        %869 = vmatprep.subr.bf16.mxu0 0
        %870 = vmatpush1.bf16.msra.mxu0 %v826
        %871 = vmatprep.subr.bf16.mxu0 0
        %872 = vmatpush1.bf16.msra.mxu0 %v827
        %873 = vmatprep.subr.bf16.mxu0 0
        %874 = vmatpush1.bf16.msra.mxu0 %v828
        %875 = vmatprep.subr.bf16.mxu0 0
        %876 = vmatpush1.bf16.msra.mxu0 %v829
        %877 = vmatprep.subr.bf16.mxu0 0
        %878 = vmatpush1.bf16.msra.mxu0 %v830
        %879 = vmatprep.mubr.bf16.mxu0 %v624
        %880 = vmatmul.mubr.bf16.gmra.mrb[0].mxu0 %v623
        %v881 = vpop.f32.mrb[0].mxu0
        %v882 = vadd.f32 0.0, %v881
        %v883 = vpop.f32.mrb[0].mxu0
        %v884 = vpop.f32.mrb[0].mxu0
        %v885 = vadd.f32 0.0, %v884
        %v886 = vpop.f32.mrb[0].mxu0
        %887 = vmatprep.mubr.bf16.mxu0 %v626
        %888 = vmatmul.mubr.bf16.gmra.mrb[0].mxu0 %v625
        %v889 = vpop.f32.mrb[0].mxu0
        %v890 = vadd.f32 0.0, %v889
        %v891 = vpop.f32.mrb[0].mxu0
        %v892 = vpop.f32.mrb[0].mxu0
        %v893 = vadd.f32 0.0, %v892
        %v894 = vpop.f32.mrb[0].mxu0
        %895 = vmatprep.mubr.bf16.mxu0 %v628
        %896 = vmatmul.mubr.bf16.gmra.mrb[0].mxu0 %v627
        %v897 = vpop.f32.mrb[0].mxu0
        %v898 = vadd.f32 0.0, %v897
        %v899 = vpop.f32.mrb[0].mxu0
        %v900 = vpop.f32.mrb[0].mxu0
        %v901 = vadd.f32 0.0, %v900
        %v902 = vpop.f32.mrb[0].mxu0
        %903 = vmatprep.mubr.bf16.mxu0 %v630
        %904 = vmatmul.mubr.bf16.gmra.mrb[0].mxu0 %v629
        %v905 = vpop.f32.mrb[0].mxu0
        %v906 = vadd.f32 0.0, %v905
        %v907 = vpop.f32.mrb[0].mxu0
        %v908 = vpop.f32.mrb[0].mxu0
        %v909 = vadd.f32 0.0, %v908
        %v910 = vpop.f32.mrb[0].mxu0
        %911 = vmatprep.mubr.bf16.mxu0 %v632
        %912 = vmatmul.mubr.bf16.gmra.mrb[0].mxu0 %v631
        %v913 = vpop.f32.mrb[0].mxu0
        %v914 = vadd.f32 0.0, %v913
        %v915 = vpop.f32.mrb[0].mxu0
        %v916 = vpop.f32.mrb[0].mxu0
        %v917 = vadd.f32 0.0, %v916
        %v918 = vpop.f32.mrb[0].mxu0
        %919 = vmatprep.mubr.bf16.mxu0 %v634
        %920 = vmatmul.mubr.bf16.gmra.mrb[0].mxu0 %v633
        %v921 = vpop.f32.mrb[0].mxu0
        %v922 = vadd.f32 0.0, %v921
        %v923 = vpop.f32.mrb[0].mxu0
        %v924 = vpop.f32.mrb[0].mxu0
        %v925 = vadd.f32 0.0, %v924
        %v926 = vpop.f32.mrb[0].mxu0
        %927 = vmatprep.mubr.bf16.mxu0 %v636
        %928 = vmatmul.mubr.bf16.gmra.mrb[0].mxu0 %v635
        %v929 = vpop.f32.mrb[0].mxu0
        %v930 = vadd.f32 0.0, %v929
        %v931 = vpop.f32.mrb[0].mxu0
        %v932 = vpop.f32.mrb[0].mxu0
        %v933 = vadd.f32 0.0, %v932
        %v934 = vpop.f32.mrb[0].mxu0
        %935 = vmatprep.mubr.bf16.mxu0 %v638
        %936 = vmatmul.mubr.bf16.gmra.mrb[0].mxu0 %v637
        %v937 = vpop.f32.mrb[0].mxu0
        %v938 = vadd.f32 0.0, %v937
        %v939 = vpop.f32.mrb[0].mxu0
        %v940 = vpop.f32.mrb[0].mxu0
        %v941 = vadd.f32 0.0, %v940
        %v942 = vpop.f32.mrb[0].mxu0
        %943 = vmatprep.mubr.bf16.mxu0 %v640
        %944 = vmatmul.mubr.bf16.gmra.mrb[0].mxu0 %v639
        %v945 = vpop.f32.mrb[0].mxu0
        %v946 = vadd.f32 0.0, %v945
        %v947 = vpop.f32.mrb[0].mxu0
        %v948 = vpop.f32.mrb[0].mxu0
        %v949 = vadd.f32 0.0, %v948
        %v950 = vpop.f32.mrb[0].mxu0
        %951 = vmatprep.mubr.bf16.mxu0 %v642
        %952 = vmatmul.mubr.bf16.gmra.mrb[0].mxu0 %v641
        %v953 = vpop.f32.mrb[0].mxu0
        %v954 = vadd.f32 0.0, %v953
        %v955 = vpop.f32.mrb[0].mxu0
        %v956 = vpop.f32.mrb[0].mxu0
        %v957 = vadd.f32 0.0, %v956
        %v958 = vpop.f32.mrb[0].mxu0
        %959 = vmatprep.mubr.bf16.mxu0 %v644
        %960 = vmatmul.mubr.bf16.gmra.mrb[0].mxu0 %v643
        %v961 = vpop.f32.mrb[0].mxu0
        %v962 = vadd.f32 0.0, %v961
        %v963 = vpop.f32.mrb[0].mxu0
        %v964 = vpop.f32.mrb[0].mxu0
        %v965 = vadd.f32 0.0, %v964
        %v966 = vpop.f32.mrb[0].mxu0
        %967 = vmatprep.mubr.bf16.mxu0 %v646
        %968 = vmatmul.mubr.bf16.gmra.mrb[0].mxu0 %v645
        %v969 = vpop.f32.mrb[0].mxu0
        %v970 = vadd.f32 0.0, %v969
        %v971 = vpop.f32.mrb[0].mxu0
        %v972 = vpop.f32.mrb[0].mxu0
        %v973 = vadd.f32 0.0, %v972
        %v974 = vpop.f32.mrb[0].mxu0
        %975 = vmatprep.mubr.bf16.mxu0 %v648
        %976 = vmatmul.mubr.bf16.gmra.mrb[0].mxu0 %v647
        %v977 = vpop.f32.mrb[0].mxu0
        %v978 = vadd.f32 0.0, %v977
        %v979 = vpop.f32.mrb[0].mxu0
        %v980 = vpop.f32.mrb[0].mxu0
        %v981 = vadd.f32 0.0, %v980
        %v982 = vpop.f32.mrb[0].mxu0
        %983 = vmatprep.mubr.bf16.mxu0 %v650
        %984 = vmatmul.mubr.bf16.gmra.mrb[0].mxu0 %v649
        %v985 = vpop.f32.mrb[0].mxu0
        %v986 = vadd.f32 0.0, %v985
        %v987 = vpop.f32.mrb[0].mxu0
        %v988 = vpop.f32.mrb[0].mxu0
        %v989 = vadd.f32 0.0, %v988
        %v990 = vpop.f32.mrb[0].mxu0
        %991 = vmatprep.mubr.bf16.mxu0 %v652
        %992 = vmatmul.mubr.bf16.gmra.mrb[0].mxu0 %v651
        %v993 = vpop.f32.mrb[0].mxu0
        %v994 = vadd.f32 0.0, %v993
        %v995 = vpop.f32.mrb[0].mxu0
        %v996 = vpop.f32.mrb[0].mxu0
        %v997 = vadd.f32 0.0, %v996
        %v998 = vpop.f32.mrb[0].mxu0
        %999 = vmatprep.mubr.bf16.mxu0 %v654
        %1000 = vmatmul.mubr.bf16.gmra.mrb[0].mxu0 %v653
        %v1001 = vpop.f32.mrb[0].mxu0
        %v1002 = vadd.f32 0.0, %v1001
        %v1003 = vpop.f32.mrb[0].mxu0
        %v1004 = vpop.f32.mrb[0].mxu0
        %v1005 = vadd.f32 0.0, %v1004
        %v1006 = vpop.f32.mrb[0].mxu0
        %1007 = vmatprep.mubr.bf16.mxu0 %v656
        %1008 = vmatmul.mubr.bf16.gmra.mrb[0].mxu0 %v655
        %v1009 = vpop.f32.mrb[0].mxu0
        %v1010 = vadd.f32 0.0, %v1009
        %v1011 = vpop.f32.mrb[0].mxu0
        %v1012 = vpop.f32.mrb[0].mxu0
        %v1013 = vadd.f32 0.0, %v1012
        %v1014 = vpop.f32.mrb[0].mxu0
        %1015 = vmatprep.mubr.bf16.mxu0 %v658
        %1016 = vmatmul.mubr.bf16.gmra.mrb[0].mxu0 %v657
        %v1017 = vpop.f32.mrb[0].mxu0
        %v1018 = vadd.f32 0.0, %v1017
        %v1019 = vpop.f32.mrb[0].mxu0
        %v1020 = vpop.f32.mrb[0].mxu0
        %v1021 = vadd.f32 0.0, %v1020
        %v1022 = vpop.f32.mrb[0].mxu0
        %1023 = vmatprep.mubr.bf16.mxu0 %v660
        %1024 = vmatmul.mubr.bf16.gmra.mrb[0].mxu0 %v659
        %v1025 = vpop.f32.mrb[0].mxu0
        %v1026 = vadd.f32 0.0, %v1025
        %v1027 = vpop.f32.mrb[0].mxu0
        %v1028 = vpop.f32.mrb[0].mxu0
        %v1029 = vadd.f32 0.0, %v1028
        %v1030 = vpop.f32.mrb[0].mxu0
        %1031 = vmatprep.mubr.bf16.mxu0 %v662
        %1032 = vmatmul.mubr.bf16.gmra.mrb[0].mxu0 %v661
        %v1033 = vpop.f32.mrb[0].mxu0
        %v1034 = vadd.f32 0.0, %v1033
        %v1035 = vpop.f32.mrb[0].mxu0
        %v1036 = vpop.f32.mrb[0].mxu0
        %v1037 = vadd.f32 0.0, %v1036
        %v1038 = vpop.f32.mrb[0].mxu0
        %1039 = vmatprep.mubr.bf16.mxu0 %v664
        %1040 = vmatmul.mubr.bf16.gmra.mrb[0].mxu0 %v663
        %v1041 = vpop.f32.mrb[0].mxu0
        %v1042 = vadd.f32 0.0, %v1041
        %v1043 = vpop.f32.mrb[0].mxu0
        %v1044 = vpop.f32.mrb[0].mxu0
        %v1045 = vadd.f32 0.0, %v1044
        %v1046 = vpop.f32.mrb[0].mxu0
        %1047 = vmatprep.mubr.bf16.mxu0 %v666
        %1048 = vmatmul.mubr.bf16.gmra.mrb[0].mxu0 %v665
        %v1049 = vpop.f32.mrb[0].mxu0
        %v1050 = vadd.f32 0.0, %v1049
        %v1051 = vpop.f32.mrb[0].mxu0
        %v1052 = vpop.f32.mrb[0].mxu0
        %v1053 = vadd.f32 0.0, %v1052
        %v1054 = vpop.f32.mrb[0].mxu0
        %1055 = vmatprep.mubr.bf16.mxu0 %v668
        %1056 = vmatmul.mubr.bf16.gmra.mrb[0].mxu0 %v667
        %v1057 = vpop.f32.mrb[0].mxu0
        %v1058 = vadd.f32 0.0, %v1057
        %v1059 = vpop.f32.mrb[0].mxu0
        %v1060 = vpop.f32.mrb[0].mxu0
        %v1061 = vadd.f32 0.0, %v1060
        %v1062 = vpop.f32.mrb[0].mxu0
        %1063 = vmatprep.mubr.bf16.mxu0 %v670
        %1064 = vmatmul.mubr.bf16.gmra.mrb[0].mxu0 %v669
        %v1065 = vpop.f32.mrb[0].mxu0
        %v1066 = vadd.f32 0.0, %v1065
        %v1067 = vpop.f32.mrb[0].mxu0
        %v1068 = vpop.f32.mrb[0].mxu0
        %v1069 = vadd.f32 0.0, %v1068
        %v1070 = vpop.f32.mrb[0].mxu0
        %1071 = vmatprep.mubr.bf16.mxu0 %v672
        %1072 = vmatmul.mubr.bf16.gmra.mrb[0].mxu0 %v671
        %v1073 = vpop.f32.mrb[0].mxu0
        %v1074 = vadd.f32 0.0, %v1073
        %v1075 = vpop.f32.mrb[0].mxu0
        %v1076 = vpop.f32.mrb[0].mxu0
        %v1077 = vadd.f32 0.0, %v1076
        %v1078 = vpop.f32.mrb[0].mxu0
        %1079 = vmatprep.mubr.bf16.mxu0 %v674
        %1080 = vmatmul.mubr.bf16.gmra.mrb[0].mxu0 %v673
        %v1081 = vpop.f32.mrb[0].mxu0
        %v1082 = vadd.f32 0.0, %v1081
        %v1083 = vpop.f32.mrb[0].mxu0
        %v1084 = vpop.f32.mrb[0].mxu0
        %v1085 = vadd.f32 0.0, %v1084
        %v1086 = vpop.f32.mrb[0].mxu0
        %1087 = vmatprep.mubr.bf16.mxu0 %v676
        %1088 = vmatmul.mubr.bf16.gmra.mrb[0].mxu0 %v675
        %v1089 = vpop.f32.mrb[0].mxu0
        %v1090 = vadd.f32 0.0, %v1089
        %v1091 = vpop.f32.mrb[0].mxu0
        %v1092 = vpop.f32.mrb[0].mxu0
        %v1093 = vadd.f32 0.0, %v1092
        %v1094 = vpop.f32.mrb[0].mxu0
        %1095 = vmatprep.mubr.bf16.mxu0 %v678
        %1096 = vmatmul.mubr.bf16.gmra.mrb[0].mxu0 %v677
        %v1097 = vpop.f32.mrb[0].mxu0
        %v1098 = vadd.f32 0.0, %v1097
        %v1099 = vpop.f32.mrb[0].mxu0
        %v1100 = vpop.f32.mrb[0].mxu0
        %v1101 = vadd.f32 0.0, %v1100
        %v1102 = vpop.f32.mrb[0].mxu0
        %1103 = vmatprep.mubr.bf16.mxu0 %v680
        %1104 = vmatmul.mubr.bf16.gmra.mrb[0].mxu0 %v679
        %v1105 = vpop.f32.mrb[0].mxu0
        %v1106 = vadd.f32 0.0, %v1105
        %v1107 = vpop.f32.mrb[0].mxu0
        %v1108 = vpop.f32.mrb[0].mxu0
        %v1109 = vadd.f32 0.0, %v1108
        %v1110 = vpop.f32.mrb[0].mxu0
        %1111 = vmatprep.mubr.bf16.mxu0 %v682
        %1112 = vmatmul.mubr.bf16.gmra.mrb[0].mxu0 %v681
        %v1113 = vpop.f32.mrb[0].mxu0
        %v1114 = vadd.f32 0.0, %v1113
        %v1115 = vpop.f32.mrb[0].mxu0
        %v1116 = vpop.f32.mrb[0].mxu0
        %v1117 = vadd.f32 0.0, %v1116
        %v1118 = vpop.f32.mrb[0].mxu0
        %1119 = vmatprep.mubr.bf16.mxu0 %v684
        %1120 = vmatmul.mubr.bf16.gmra.mrb[0].mxu0 %v683
        %v1121 = vpop.f32.mrb[0].mxu0
        %v1122 = vadd.f32 0.0, %v1121
        %v1123 = vpop.f32.mrb[0].mxu0
        %v1124 = vpop.f32.mrb[0].mxu0
        %v1125 = vadd.f32 0.0, %v1124
        %v1126 = vpop.f32.mrb[0].mxu0
        %1127 = vmatprep.mubr.bf16.mxu0 %v686
        %1128 = vmatmul.mubr.bf16.gmra.mrb[0].mxu0 %v685
        %v1129 = vpop.f32.mrb[0].mxu0
        %v1130 = vadd.f32 0.0, %v1129
        %v1131 = vpop.f32.mrb[0].mxu0
        %v1132 = vpop.f32.mrb[0].mxu0
        %v1133 = vadd.f32 0.0, %v1132
        %v1134 = vpop.f32.mrb[0].mxu0
        %1135 = vdwg.mxu0
        %v1136 = vadd.f32 %v303, %v882
        %v1137 = vadd.f32 %v304, %v885
        %v1138 = vadd.f32 %v305, %v890
        %v1139 = vadd.f32 %v306, %v893
        %v1140 = vadd.f32 %v307, %v898
        %v1141 = vadd.f32 %v308, %v901
        %v1142 = vadd.f32 %v309, %v906
        %v1143 = vadd.f32 %v310, %v909
        %v1144 = vadd.f32 %v311, %v914
        %v1145 = vadd.f32 %v312, %v917
        %v1146 = vadd.f32 %v313, %v922
        %v1147 = vadd.f32 %v314, %v925
        %v1148 = vadd.f32 %v315, %v930
        %v1149 = vadd.f32 %v316, %v933
        %v1150 = vadd.f32 %v317, %v938
        %v1151 = vadd.f32 %v318, %v941
        %v1152 = vadd.f32 %v319, %v946
        %v1153 = vadd.f32 %v320, %v949
        %v1154 = vadd.f32 %v321, %v954
        %v1155 = vadd.f32 %v322, %v957
        %v1156 = vadd.f32 %v323, %v962
        %v1157 = vadd.f32 %v324, %v965
        %v1158 = vadd.f32 %v325, %v970
        %v1159 = vadd.f32 %v326, %v973
        %v1160 = vadd.f32 %v327, %v978
        %v1161 = vadd.f32 %v328, %v981
        %v1162 = vadd.f32 %v329, %v986
        %v1163 = vadd.f32 %v330, %v989
        %v1164 = vadd.f32 %v331, %v994
        %v1165 = vadd.f32 %v332, %v997
        %v1166 = vadd.f32 %v333, %v1002
        %v1167 = vadd.f32 %v334, %v1005
        %v1168 = vadd.f32 %v335, %v1010
        %v1169 = vadd.f32 %v336, %v1013
        %v1170 = vadd.f32 %v337, %v1018
        %v1171 = vadd.f32 %v338, %v1021
        %v1172 = vadd.f32 %v339, %v1026
        %v1173 = vadd.f32 %v340, %v1029
        %v1174 = vadd.f32 %v341, %v1034
        %v1175 = vadd.f32 %v342, %v1037
        %v1176 = vadd.f32 %v343, %v1042
        %v1177 = vadd.f32 %v344, %v1045
        %v1178 = vadd.f32 %v345, %v1050
        %v1179 = vadd.f32 %v346, %v1053
        %v1180 = vadd.f32 %v347, %v1058
        %v1181 = vadd.f32 %v348, %v1061
        %v1182 = vadd.f32 %v349, %v1066
        %v1183 = vadd.f32 %v350, %v1069
        %v1184 = vadd.f32 %v351, %v1074
        %v1185 = vadd.f32 %v352, %v1077
        %v1186 = vadd.f32 %v353, %v1082
        %v1187 = vadd.f32 %v354, %v1085
        %v1188 = vadd.f32 %v355, %v1090
        %v1189 = vadd.f32 %v356, %v1093
        %v1190 = vadd.f32 %v357, %v1098
        %v1191 = vadd.f32 %v358, %v1101
        %v1192 = vadd.f32 %v359, %v1106
        %v1193 = vadd.f32 %v360, %v1109
        %v1194 = vadd.f32 %v361, %v1114
        %v1195 = vadd.f32 %v362, %v1117
        %v1196 = vadd.f32 %v363, %v1122
        %v1197 = vadd.f32 %v364, %v1125
        %v1198 = vadd.f32 %v365, %v1130
        %v1199 = vadd.f32 %v366, %v1133
        %1200 = vst [vmem:[#allocation2] sm:$0xff] %v1136
        %1201 = vst [vmem:[#allocation2 + $0x8] sm:$0xff] %v1137
        %1202 = vst [vmem:[#allocation2 + $0x10] sm:$0xff] %v1138
        %1203 = vst [vmem:[#allocation2 + $0x18] sm:$0xff] %v1139
        %1204 = vst [vmem:[#allocation2 + $0x20] sm:$0xff] %v1140
        %1205 = vst [vmem:[#allocation2 + $0x28] sm:$0xff] %v1141
        %1206 = vst [vmem:[#allocation2 + $0x30] sm:$0xff] %v1142
        %1207 = vst [vmem:[#allocation2 + $0x38] sm:$0xff] %v1143
        %1208 = vst [vmem:[#allocation2 + $0x40] sm:$0xff] %v1144
        %1209 = vst [vmem:[#allocation2 + $0x48] sm:$0xff] %v1145
        %1210 = vst [vmem:[#allocation2 + $0x50] sm:$0xff] %v1146
        %1211 = vst [vmem:[#allocation2 + $0x58] sm:$0xff] %v1147
        %1212 = vst [vmem:[#allocation2 + $0x60] sm:$0xff] %v1148
        %1213 = vst [vmem:[#allocation2 + $0x68] sm:$0xff] %v1149
        %1214 = vst [vmem:[#allocation2 + $0x70] sm:$0xff] %v1150
        %1215 = vst [vmem:[#allocation2 + $0x78] sm:$0xff] %v1151
        %1216 = vst [vmem:[#allocation2 + $0x80] sm:$0xff] %v1152
        %1217 = vst [vmem:[#allocation2 + $0x88] sm:$0xff] %v1153
        %1218 = vst [vmem:[#allocation2 + $0x90] sm:$0xff] %v1154
        %1219 = vst [vmem:[#allocation2 + $0x98] sm:$0xff] %v1155
        %1220 = vst [vmem:[#allocation2 + $0xa0] sm:$0xff] %v1156
        %1221 = vst [vmem:[#allocation2 + $0xa8] sm:$0xff] %v1157
        %1222 = vst [vmem:[#allocation2 + $0xb0] sm:$0xff] %v1158
        %1223 = vst [vmem:[#allocation2 + $0xb8] sm:$0xff] %v1159
        %1224 = vst [vmem:[#allocation2 + $0xc0] sm:$0xff] %v1160
        %1225 = vst [vmem:[#allocation2 + $0xc8] sm:$0xff] %v1161
        %1226 = vst [vmem:[#allocation2 + $0xd0] sm:$0xff] %v1162
        %1227 = vst [vmem:[#allocation2 + $0xd8] sm:$0xff] %v1163
        %1228 = vst [vmem:[#allocation2 + $0xe0] sm:$0xff] %v1164
        %1229 = vst [vmem:[#allocation2 + $0xe8] sm:$0xff] %v1165
        %1230 = vst [vmem:[#allocation2 + $0xf0] sm:$0xff] %v1166
        %1231 = vst [vmem:[#allocation2 + $0xf8] sm:$0xff] %v1167
        %1232 = vst [vmem:[#allocation2 + $0x100] sm:$0xff] %v1168
        %1233 = vst [vmem:[#allocation2 + $0x108] sm:$0xff] %v1169
        %1234 = vst [vmem:[#allocation2 + $0x110] sm:$0xff] %v1170
        %1235 = vst [vmem:[#allocation2 + $0x118] sm:$0xff] %v1171
        %1236 = vst [vmem:[#allocation2 + $0x120] sm:$0xff] %v1172
        %1237 = vst [vmem:[#allocation2 + $0x128] sm:$0xff] %v1173
        %1238 = vst [vmem:[#allocation2 + $0x130] sm:$0xff] %v1174
        %1239 = vst [vmem:[#allocation2 + $0x138] sm:$0xff] %v1175
        %1240 = vst [vmem:[#allocation2 + $0x140] sm:$0xff] %v1176
        %1241 = vst [vmem:[#allocation2 + $0x148] sm:$0xff] %v1177
        %1242 = vst [vmem:[#allocation2 + $0x150] sm:$0xff] %v1178
        %1243 = vst [vmem:[#allocation2 + $0x158] sm:$0xff] %v1179
        %1244 = vst [vmem:[#allocation2 + $0x160] sm:$0xff] %v1180
        %1245 = vst [vmem:[#allocation2 + $0x168] sm:$0xff] %v1181
        %1246 = vst [vmem:[#allocation2 + $0x170] sm:$0xff] %v1182
        %1247 = vst [vmem:[#allocation2 + $0x178] sm:$0xff] %v1183
        %1248 = vst [vmem:[#allocation2 + $0x180] sm:$0xff] %v1184
        %1249 = vst [vmem:[#allocation2 + $0x188] sm:$0xff] %v1185
        %1250 = vst [vmem:[#allocation2 + $0x190] sm:$0xff] %v1186
        %1251 = vst [vmem:[#allocation2 + $0x198] sm:$0xff] %v1187
        %1252 = vst [vmem:[#allocation2 + $0x1a0] sm:$0xff] %v1188
        %1253 = vst [vmem:[#allocation2 + $0x1a8] sm:$0xff] %v1189
        %1254 = vst [vmem:[#allocation2 + $0x1b0] sm:$0xff] %v1190
        %1255 = vst [vmem:[#allocation2 + $0x1b8] sm:$0xff] %v1191
        %1256 = vst [vmem:[#allocation2 + $0x1c0] sm:$0xff] %v1192
        %1257 = vst [vmem:[#allocation2 + $0x1c8] sm:$0xff] %v1193
        %1258 = vst [vmem:[#allocation2 + $0x1d0] sm:$0xff] %v1194
        %1259 = vst [vmem:[#allocation2 + $0x1d8] sm:$0xff] %v1195
        %1260 = vst [vmem:[#allocation2 + $0x1e0] sm:$0xff] %v1196
        %1261 = vst [vmem:[#allocation2 + $0x1e8] sm:$0xff] %v1197
        %1262 = vst [vmem:[#allocation2 + $0x1f0] sm:$0xff] %v1198
        %1263 = vst [vmem:[#allocation2 + $0x1f8] sm:$0xff] %v1199
        %p1264 = scmp.eq.s32.totalorder %s25, 3
        // Predicated region
        $region41: #{tpu_custom_call.1} parent=27 // pred_check
          %p1265 = pneg %p1264
        $region42: #{tpu_custom_call.1} parent=27 // pred_check_branch
          %1267 = sbr.rel (%p1265) target = $region44
        $region43: #{tpu_custom_call.1} parent=27 // pred_region
          %v1268 = vld [vmem:[#allocation2] sm:$0xff]
          %v1269 = vld [vmem:[#allocation2 + $0x8] sm:$0xff]
          %v1270 = vld [vmem:[#allocation2 + $0x10] sm:$0xff]
          %v1271 = vld [vmem:[#allocation2 + $0x18] sm:$0xff]
          %v1272 = vld [vmem:[#allocation2 + $0x20] sm:$0xff]
          %v1273 = vld [vmem:[#allocation2 + $0x28] sm:$0xff]
          %v1274 = vld [vmem:[#allocation2 + $0x30] sm:$0xff]
          %v1275 = vld [vmem:[#allocation2 + $0x38] sm:$0xff]
          %v1276 = vld [vmem:[#allocation2 + $0x40] sm:$0xff]
          %v1277 = vld [vmem:[#allocation2 + $0x48] sm:$0xff]
          %v1278 = vld [vmem:[#allocation2 + $0x50] sm:$0xff]
          %v1279 = vld [vmem:[#allocation2 + $0x58] sm:$0xff]
          %v1280 = vld [vmem:[#allocation2 + $0x60] sm:$0xff]
          %v1281 = vld [vmem:[#allocation2 + $0x68] sm:$0xff]
          %v1282 = vld [vmem:[#allocation2 + $0x70] sm:$0xff]
          %v1283 = vld [vmem:[#allocation2 + $0x78] sm:$0xff]
          %v1284 = vld [vmem:[#allocation2 + $0x80] sm:$0xff]
          %v1285 = vld [vmem:[#allocation2 + $0x88] sm:$0xff]
          %v1286 = vld [vmem:[#allocation2 + $0x90] sm:$0xff]
          %v1287 = vld [vmem:[#allocation2 + $0x98] sm:$0xff]
          %v1288 = vld [vmem:[#allocation2 + $0xa0] sm:$0xff]
          %v1289 = vld [vmem:[#allocation2 + $0xa8] sm:$0xff]
          %v1290 = vld [vmem:[#allocation2 + $0xb0] sm:$0xff]
          %v1291 = vld [vmem:[#allocation2 + $0xb8] sm:$0xff]
          %v1292 = vld [vmem:[#allocation2 + $0xc0] sm:$0xff]
          %v1293 = vld [vmem:[#allocation2 + $0xc8] sm:$0xff]
          %v1294 = vld [vmem:[#allocation2 + $0xd0] sm:$0xff]
          %v1295 = vld [vmem:[#allocation2 + $0xd8] sm:$0xff]
          %v1296 = vld [vmem:[#allocation2 + $0xe0] sm:$0xff]
          %v1297 = vld [vmem:[#allocation2 + $0xe8] sm:$0xff]
          %v1298 = vld [vmem:[#allocation2 + $0xf0] sm:$0xff]
          %v1299 = vld [vmem:[#allocation2 + $0xf8] sm:$0xff]
          %v1300 = vld [vmem:[#allocation2 + $0x100] sm:$0xff]
          %v1301 = vld [vmem:[#allocation2 + $0x108] sm:$0xff]
          %v1302 = vld [vmem:[#allocation2 + $0x110] sm:$0xff]
          %v1303 = vld [vmem:[#allocation2 + $0x118] sm:$0xff]
          %v1304 = vld [vmem:[#allocation2 + $0x120] sm:$0xff]
          %v1305 = vld [vmem:[#allocation2 + $0x128] sm:$0xff]
          %v1306 = vld [vmem:[#allocation2 + $0x130] sm:$0xff]
          %v1307 = vld [vmem:[#allocation2 + $0x138] sm:$0xff]
          %v1308 = vld [vmem:[#allocation2 + $0x140] sm:$0xff]
          %v1309 = vld [vmem:[#allocation2 + $0x148] sm:$0xff]
          %v1310 = vld [vmem:[#allocation2 + $0x150] sm:$0xff]
          %v1311 = vld [vmem:[#allocation2 + $0x158] sm:$0xff]
          %v1312 = vld [vmem:[#allocation2 + $0x160] sm:$0xff]
          %v1313 = vld [vmem:[#allocation2 + $0x168] sm:$0xff]
          %v1314 = vld [vmem:[#allocation2 + $0x170] sm:$0xff]
          %v1315 = vld [vmem:[#allocation2 + $0x178] sm:$0xff]
          %v1316 = vld [vmem:[#allocation2 + $0x180] sm:$0xff]
          %v1317 = vld [vmem:[#allocation2 + $0x188] sm:$0xff]
          %v1318 = vld [vmem:[#allocation2 + $0x190] sm:$0xff]
          %v1319 = vld [vmem:[#allocation2 + $0x198] sm:$0xff]
          %v1320 = vld [vmem:[#allocation2 + $0x1a0] sm:$0xff]
          %v1321 = vld [vmem:[#allocation2 + $0x1a8] sm:$0xff]
          %v1322 = vld [vmem:[#allocation2 + $0x1b0] sm:$0xff]
          %v1323 = vld [vmem:[#allocation2 + $0x1b8] sm:$0xff]
          %v1324 = vld [vmem:[#allocation2 + $0x1c0] sm:$0xff]
          %v1325 = vld [vmem:[#allocation2 + $0x1c8] sm:$0xff]
          %v1326 = vld [vmem:[#allocation2 + $0x1d0] sm:$0xff]
          %v1327 = vld [vmem:[#allocation2 + $0x1d8] sm:$0xff]
          %v1328 = vld [vmem:[#allocation2 + $0x1e0] sm:$0xff]
          %v1329 = vld [vmem:[#allocation2 + $0x1e8] sm:$0xff]
          %v1330 = vld [vmem:[#allocation2 + $0x1f0] sm:$0xff]
          %v1331 = vld [vmem:[#allocation2 + $0x1f8] sm:$0xff]
          %v1332 = vpack.c.bf16 %v1269, %v1268
          %v1333 = vpack.c.bf16 %v1271, %v1270
          %v1334 = vpack.c.bf16 %v1273, %v1272
          %v1335 = vpack.c.bf16 %v1275, %v1274
          %v1336 = vpack.c.bf16 %v1277, %v1276
          %v1337 = vpack.c.bf16 %v1279, %v1278
          %v1338 = vpack.c.bf16 %v1281, %v1280
          %v1339 = vpack.c.bf16 %v1283, %v1282
          %v1340 = vpack.c.bf16 %v1285, %v1284
          %v1341 = vpack.c.bf16 %v1287, %v1286
          %v1342 = vpack.c.bf16 %v1289, %v1288
          %v1343 = vpack.c.bf16 %v1291, %v1290
          %v1344 = vpack.c.bf16 %v1293, %v1292
          %v1345 = vpack.c.bf16 %v1295, %v1294
          %v1346 = vpack.c.bf16 %v1297, %v1296
          %v1347 = vpack.c.bf16 %v1299, %v1298
          %v1348 = vpack.c.bf16 %v1301, %v1300
          %v1349 = vpack.c.bf16 %v1303, %v1302
          %v1350 = vpack.c.bf16 %v1305, %v1304
          %v1351 = vpack.c.bf16 %v1307, %v1306
          %v1352 = vpack.c.bf16 %v1309, %v1308
          %v1353 = vpack.c.bf16 %v1311, %v1310
          %v1354 = vpack.c.bf16 %v1313, %v1312
          %v1355 = vpack.c.bf16 %v1315, %v1314
          %v1356 = vpack.c.bf16 %v1317, %v1316
          %v1357 = vpack.c.bf16 %v1319, %v1318
          %v1358 = vpack.c.bf16 %v1321, %v1320
          %v1359 = vpack.c.bf16 %v1323, %v1322
          %v1360 = vpack.c.bf16 %v1325, %v1324
          %v1361 = vpack.c.bf16 %v1327, %v1326
          %v1362 = vpack.c.bf16 %v1329, %v1328
          %v1363 = vpack.c.bf16 %v1331, %v1330
          %v1396 = vunpack.c.l.b16 %v1332
          %v1397 = vunpack.c.h.b16 %v1332
          %v1398 = vunpack.c.l.b16 %v1333
          %v1399 = vunpack.c.h.b16 %v1333
          %v1400 = vunpack.c.l.b16 %v1334
          %v1401 = vunpack.c.h.b16 %v1334
          %v1402 = vunpack.c.l.b16 %v1335
          %v1403 = vunpack.c.h.b16 %v1335
          %v1404 = vunpack.c.l.b16 %v1336
          %v1405 = vunpack.c.h.b16 %v1336
          %v1406 = vunpack.c.l.b16 %v1337
          %v1407 = vunpack.c.h.b16 %v1337
          %v1408 = vunpack.c.l.b16 %v1338
          %v1409 = vunpack.c.h.b16 %v1338
          %v1410 = vunpack.c.l.b16 %v1339
          %v1411 = vunpack.c.h.b16 %v1339
          %v1412 = vunpack.c.l.b16 %v1340
          %v1413 = vunpack.c.h.b16 %v1340
          %v1414 = vunpack.c.l.b16 %v1341
          %v1415 = vunpack.c.h.b16 %v1341
          %v1416 = vunpack.c.l.b16 %v1342
          %v1417 = vunpack.c.h.b16 %v1342
          %v1418 = vunpack.c.l.b16 %v1343
          %v1419 = vunpack.c.h.b16 %v1343
          %v1420 = vunpack.c.l.b16 %v1344
          %v1421 = vunpack.c.h.b16 %v1344
          %v1422 = vunpack.c.l.b16 %v1345
          %v1423 = vunpack.c.h.b16 %v1345
          %v1424 = vunpack.c.l.b16 %v1346
          %v1425 = vunpack.c.h.b16 %v1346
          %v1426 = vunpack.c.l.b16 %v1347
          %v1427 = vunpack.c.h.b16 %v1347
          %v1428 = vunpack.c.l.b16 %v1348
          %v1429 = vunpack.c.h.b16 %v1348
          %v1430 = vunpack.c.l.b16 %v1349
          %v1431 = vunpack.c.h.b16 %v1349
          %v1432 = vunpack.c.l.b16 %v1350
          %v1433 = vunpack.c.h.b16 %v1350
          %v1434 = vunpack.c.l.b16 %v1351
          %v1435 = vunpack.c.h.b16 %v1351
          %v1436 = vunpack.c.l.b16 %v1352
          %v1437 = vunpack.c.h.b16 %v1352
          %v1438 = vunpack.c.l.b16 %v1353
          %v1439 = vunpack.c.h.b16 %v1353
          %v1440 = vunpack.c.l.b16 %v1354
          %v1441 = vunpack.c.h.b16 %v1354
          %v1442 = vunpack.c.l.b16 %v1355
          %v1443 = vunpack.c.h.b16 %v1355
          %v1444 = vunpack.c.l.b16 %v1356
          %v1445 = vunpack.c.h.b16 %v1356
          %v1446 = vunpack.c.l.b16 %v1357
          %v1447 = vunpack.c.h.b16 %v1357
          %v1448 = vunpack.c.l.b16 %v1358
          %v1449 = vunpack.c.h.b16 %v1358
          %v1450 = vunpack.c.l.b16 %v1359
          %v1451 = vunpack.c.h.b16 %v1359
          %v1452 = vunpack.c.l.b16 %v1360
          %v1453 = vunpack.c.h.b16 %v1360
          %v1454 = vunpack.c.l.b16 %v1361
          %v1455 = vunpack.c.h.b16 %v1361
          %v1456 = vunpack.c.l.b16 %v1362
          %v1457 = vunpack.c.h.b16 %v1362
          %v1458 = vunpack.c.l.b16 %v1363
          %v1459 = vunpack.c.h.b16 %v1363
          %v1460 = vpack.c.b16 %v1396, %v1396
          %v1461 = vpack.c.b16 %v1397, %v1397
          %v1462 = vpack.c.b16 %v1398, %v1398
          %v1463 = vpack.c.b16 %v1399, %v1399
          %v1464 = vpack.c.b16 %v1400, %v1400
          %v1465 = vpack.c.b16 %v1401, %v1401
          %v1466 = vpack.c.b16 %v1402, %v1402
          %v1467 = vpack.c.b16 %v1403, %v1403
          %v1468 = vpack.c.b16 %v1404, %v1404
          %v1469 = vpack.c.b16 %v1405, %v1405
          %v1470 = vpack.c.b16 %v1406, %v1406
          %v1471 = vpack.c.b16 %v1407, %v1407
          %v1472 = vpack.c.b16 %v1408, %v1408
          %v1473 = vpack.c.b16 %v1409, %v1409
          %v1474 = vpack.c.b16 %v1410, %v1410
          %v1475 = vpack.c.b16 %v1411, %v1411
          %v1476 = vpack.c.b16 %v1412, %v1412
          %v1477 = vpack.c.b16 %v1413, %v1413
          %v1478 = vpack.c.b16 %v1414, %v1414
          %v1479 = vpack.c.b16 %v1415, %v1415
          %v1480 = vpack.c.b16 %v1416, %v1416
          %v1481 = vpack.c.b16 %v1417, %v1417
          %v1482 = vpack.c.b16 %v1418, %v1418
          %v1483 = vpack.c.b16 %v1419, %v1419
          %v1484 = vpack.c.b16 %v1420, %v1420
          %v1485 = vpack.c.b16 %v1421, %v1421
          %v1486 = vpack.c.b16 %v1422, %v1422
          %v1487 = vpack.c.b16 %v1423, %v1423
          %v1488 = vpack.c.b16 %v1424, %v1424
          %v1489 = vpack.c.b16 %v1425, %v1425
          %v1490 = vpack.c.b16 %v1426, %v1426
          %v1491 = vpack.c.b16 %v1427, %v1427
          %v1492 = vpack.c.b16 %v1428, %v1428
          %v1493 = vpack.c.b16 %v1429, %v1429
          %v1494 = vpack.c.b16 %v1430, %v1430
          %v1495 = vpack.c.b16 %v1431, %v1431
          %v1496 = vpack.c.b16 %v1432, %v1432
          %v1497 = vpack.c.b16 %v1433, %v1433
          %v1498 = vpack.c.b16 %v1434, %v1434
          %v1499 = vpack.c.b16 %v1435, %v1435
          %v1500 = vpack.c.b16 %v1436, %v1436
          %v1501 = vpack.c.b16 %v1437, %v1437
          %v1502 = vpack.c.b16 %v1438, %v1438
          %v1503 = vpack.c.b16 %v1439, %v1439
          %v1504 = vpack.c.b16 %v1440, %v1440
          %v1505 = vpack.c.b16 %v1441, %v1441
          %v1506 = vpack.c.b16 %v1442, %v1442
          %v1507 = vpack.c.b16 %v1443, %v1443
          %v1508 = vpack.c.b16 %v1444, %v1444
          %v1509 = vpack.c.b16 %v1445, %v1445
          %v1510 = vpack.c.b16 %v1446, %v1446
          %v1511 = vpack.c.b16 %v1447, %v1447
          %v1512 = vpack.c.b16 %v1448, %v1448
          %v1513 = vpack.c.b16 %v1449, %v1449
          %v1514 = vpack.c.b16 %v1450, %v1450
          %v1515 = vpack.c.b16 %v1451, %v1451
          %v1516 = vpack.c.b16 %v1452, %v1452
          %v1517 = vpack.c.b16 %v1453, %v1453
          %v1518 = vpack.c.b16 %v1454, %v1454
          %v1519 = vpack.c.b16 %v1455, %v1455
          %v1520 = vpack.c.b16 %v1456, %v1456
          %v1521 = vpack.c.b16 %v1457, %v1457
          %v1522 = vpack.c.b16 %v1458, %v1458
          %v1523 = vpack.c.b16 %v1459, %v1459
          %1588 = vst [vmem:[%s193] sm:$0xf] %v1460
          %1589 = vst [vmem:[%s193 + $0x4] sm:$0xf] %v1461
          %1590 = vst [vmem:[%s193 + $0x8] sm:$0xf] %v1462
          %1591 = vst [vmem:[%s193 + $0xc] sm:$0xf] %v1463
          %1592 = vst [vmem:[%s193 + $0x10] sm:$0xf] %v1464
          %1593 = vst [vmem:[%s193 + $0x14] sm:$0xf] %v1465
          %1594 = vst [vmem:[%s193 + $0x18] sm:$0xf] %v1466
          %1595 = vst [vmem:[%s193 + $0x1c] sm:$0xf] %v1467
          %1596 = vst [vmem:[%s193 + $0x20] sm:$0xf] %v1468
          %1597 = vst [vmem:[%s193 + $0x24] sm:$0xf] %v1469
          %1598 = vst [vmem:[%s193 + $0x28] sm:$0xf] %v1470
          %1599 = vst [vmem:[%s193 + $0x2c] sm:$0xf] %v1471
          %1600 = vst [vmem:[%s193 + $0x30] sm:$0xf] %v1472
          %1601 = vst [vmem:[%s193 + $0x34] sm:$0xf] %v1473
          %1602 = vst [vmem:[%s193 + $0x38] sm:$0xf] %v1474
          %1603 = vst [vmem:[%s193 + $0x3c] sm:$0xf] %v1475
          %1604 = vst [vmem:[%s193 + $0x40] sm:$0xf] %v1476
          %1605 = vst [vmem:[%s193 + $0x44] sm:$0xf] %v1477
          %1606 = vst [vmem:[%s193 + $0x48] sm:$0xf] %v1478
          %1607 = vst [vmem:[%s193 + $0x4c] sm:$0xf] %v1479
          %1608 = vst [vmem:[%s193 + $0x50] sm:$0xf] %v1480
          %1609 = vst [vmem:[%s193 + $0x54] sm:$0xf] %v1481
          %1610 = vst [vmem:[%s193 + $0x58] sm:$0xf] %v1482
          %1611 = vst [vmem:[%s193 + $0x5c] sm:$0xf] %v1483
          %1612 = vst [vmem:[%s193 + $0x60] sm:$0xf] %v1484
          %1613 = vst [vmem:[%s193 + $0x64] sm:$0xf] %v1485
          %1614 = vst [vmem:[%s193 + $0x68] sm:$0xf] %v1486
          %1615 = vst [vmem:[%s193 + $0x6c] sm:$0xf] %v1487
          %1616 = vst [vmem:[%s193 + $0x70] sm:$0xf] %v1488
          %1617 = vst [vmem:[%s193 + $0x74] sm:$0xf] %v1489
          %1618 = vst [vmem:[%s193 + $0x78] sm:$0xf] %v1490
          %1619 = vst [vmem:[%s193 + $0x7c] sm:$0xf] %v1491
          %1620 = vst [vmem:[%s193 + $0x80] sm:$0xf] %v1492
          %1621 = vst [vmem:[%s193 + $0x84] sm:$0xf] %v1493
          %1622 = vst [vmem:[%s193 + $0x88] sm:$0xf] %v1494
          %1623 = vst [vmem:[%s193 + $0x8c] sm:$0xf] %v1495
          %1624 = vst [vmem:[%s193 + $0x90] sm:$0xf] %v1496
          %1625 = vst [vmem:[%s193 + $0x94] sm:$0xf] %v1497
          %1626 = vst [vmem:[%s193 + $0x98] sm:$0xf] %v1498
          %1627 = vst [vmem:[%s193 + $0x9c] sm:$0xf] %v1499
          %1628 = vst [vmem:[%s193 + $0xa0] sm:$0xf] %v1500
          %1629 = vst [vmem:[%s193 + $0xa4] sm:$0xf] %v1501
          %1630 = vst [vmem:[%s193 + $0xa8] sm:$0xf] %v1502
          %1631 = vst [vmem:[%s193 + $0xac] sm:$0xf] %v1503
          %1632 = vst [vmem:[%s193 + $0xb0] sm:$0xf] %v1504
          %1633 = vst [vmem:[%s193 + $0xb4] sm:$0xf] %v1505
          %1634 = vst [vmem:[%s193 + $0xb8] sm:$0xf] %v1506
          %1635 = vst [vmem:[%s193 + $0xbc] sm:$0xf] %v1507
          %1636 = vst [vmem:[%s193 + $0xc0] sm:$0xf] %v1508
          %1637 = vst [vmem:[%s193 + $0xc4] sm:$0xf] %v1509
          %1638 = vst [vmem:[%s193 + $0xc8] sm:$0xf] %v1510
          %1639 = vst [vmem:[%s193 + $0xcc] sm:$0xf] %v1511
          %1640 = vst [vmem:[%s193 + $0xd0] sm:$0xf] %v1512
          %1641 = vst [vmem:[%s193 + $0xd4] sm:$0xf] %v1513
          %1642 = vst [vmem:[%s193 + $0xd8] sm:$0xf] %v1514
          %1643 = vst [vmem:[%s193 + $0xdc] sm:$0xf] %v1515
          %1644 = vst [vmem:[%s193 + $0xe0] sm:$0xf] %v1516
          %1645 = vst [vmem:[%s193 + $0xe4] sm:$0xf] %v1517
          %1646 = vst [vmem:[%s193 + $0xe8] sm:$0xf] %v1518
          %1647 = vst [vmem:[%s193 + $0xec] sm:$0xf] %v1519
          %1648 = vst [vmem:[%s193 + $0xf0] sm:$0xf] %v1520
          %1649 = vst [vmem:[%s193 + $0xf4] sm:$0xf] %v1521
          %1650 = vst [vmem:[%s193 + $0xf8] sm:$0xf] %v1522
          %1651 = vst [vmem:[%s193 + $0xfc] sm:$0xf] %v1523
        $region44: #{tpu_custom_call.1} parent=27 // pred_fallthru
          _
        %s1652 = sand.u32 %s89, 1
        %s1653 = scalar_lea.sflag [#allocation5], %s1652
        %s1654 = sand.u32 %s89, 1
        %s1655 = smul.addr %s1654, 256
        %s1656 = scalar_lea.vmem [#allocation8], %s1655
        // Predicated region
        $region45: #{tpu_custom_call.1} parent=27 // pred_check
          %p1657 = pneg %p99
        $region46: #{tpu_custom_call.1} parent=27 // pred_check_branch
          %1659 = sbr.rel (%p1657) target = $region48
        $region47: #{tpu_custom_call.1} parent=27 // pred_region
          %s1660 = smul.u32 64, %s24
          %s1662 = ssub.s32 4096, 4096
          %1663 = vsyncadd %s1653, %s1662
          %s1664 = smul.addr %s1660, 64
          %s1665 = scalar_lea.hbm %s2, %s1664
          %s1666 = sshll.u32 %s1656, 4
          %s1667 = int_to_ptr.vmem [resolvable:$true] %s1666
          %1672 = dma.vmem_to_hbm [thread:$0]  %s1667, 4096, %s1665, %s1653, 64, 64, 4
        $region48: #{tpu_custom_call.1} parent=27 // pred_fallthru
          _
      $region28: #{tpu_custom_call.1} parent=5 // pred_fallthru
        _
      %p1673 = scmp.le.s32.totalorder 2, %s15
      // Predicated region
      $region49: #{tpu_custom_call.1} parent=5 // pred_check
        %p1674 = pneg %p1673
      $region50: #{tpu_custom_call.1} parent=5 // pred_check_branch
        %1676 = sbr.rel (%p1674) target = $region52
      $region51: #{tpu_custom_call.1} parent=5 // pred_region
        %s1677 = ssub.s32 %s15, 2
        // Predicated region
        $region53: #{tpu_custom_call.1} parent=51 // pred_check
          %p1678 = pneg %p105
        $region54: #{tpu_custom_call.1} parent=51 // pred_check_branch
          %1680 = sbr.rel (%p1678) target = $region56
        $region55: #{tpu_custom_call.1} parent=51 // pred_region
          %s1681 = sand.u32 %s90, 1
          %s1682 = scalar_lea.sflag [#allocation5], %s1681
          %s1683 = sand.u32 %s90, 1
          %s1684 = smul.addr %s1683, 256
          %s1685 = scalar_lea.vmem [#allocation8], %s1684
          %1686 = dma.done %s1682, 4096
        $region56: #{tpu_custom_call.1} parent=51 // pred_fallthru
          _
      $region52: #{tpu_custom_call.1} parent=5 // pred_fallthru
        _
    $region6: #{tpu_custom_call.1} parent=1 // loop_footer
      %s19 = sadd.s32 1, %s15
    $region7: #{tpu_custom_call.1} parent=1 // loop_footer_branch
      %14 = sbr.rel target = $region3
    $region8: #{tpu_custom_call.1} parent=1 // loop_exit
      _
    %1687 = vsyncpa [#allocation4], 1
    %s1688 = scalar_lea.sflag [#allocation4], 1
    %1689 = vsyncpa %s1688, 1
    %1690 = vsyncpa [#allocation7], 1
    %1691 = vsyncpa [#allocation5], 1
    %s1692 = scalar_lea.sflag [#allocation5], 1
    %1693 = vsyncpa %s1692, 1

</llo_original>
